<compile_context>
chip_gen: v6e
topology: v6e:2x2x1
jax: 0.10.0
libtpu: 0.0.40
codegen_flags: <defaults>
</compile_context>

<pallas_src>
import functools

import jax
import jax.numpy as jnp
from jax.experimental import pallas as pl
from jax.experimental.pallas import tpu as pltpu

LN_EPS = 1e-12                    # BERT default LayerNorm eps
COMPUTE_DTYPE = jnp.bfloat16      # MXU operand dtype; epilogues stay in f32


# ----------------------------------------------------------------------------
# Generation-aware configuration (VMEM budget, tile targets, exp dtype)
# ----------------------------------------------------------------------------
def _device_kind():
    try:
        return jax.devices()[0].device_kind.lower()
    except Exception:
        return ""


def _hw_config():
    kind = _device_kind()
    if "v7" in kind:
        # v7x: 64 MiB VMEM per TC — keep headroom; bf16 EUP available.
        return dict(vmem_limit_bytes=48 * 1024 * 1024, ffn_row_tile=1024,
                    kv_tile=1024, exp_dtype=jnp.bfloat16)
    if "v6" in kind:
        # v6e: 128 MiB VMEM — use most of it; bf16 EUP available.
        return dict(vmem_limit_bytes=96 * 1024 * 1024, ffn_row_tile=2048,
                    kv_tile=2048, exp_dtype=jnp.bfloat16)
    if "v5" in kind:
        # v5e/v5p: 128 MiB VMEM; no bf16 EUP/VPU on v5e -> keep f32 epilogues.
        return dict(vmem_limit_bytes=96 * 1024 * 1024, ffn_row_tile=2048,
                    kv_tile=2048, exp_dtype=jnp.float32)
    # Unknown generation: leave compiler default VMEM limit, conservative tiles.
    return dict(vmem_limit_bytes=None, ffn_row_tile=1024,
                kv_tile=1024, exp_dtype=jnp.float32)


_HW = _hw_config()


def _mosaic_params(dimension_semantics):
    return pltpu.CompilerParams(
        dimension_semantics=dimension_semantics,
        vmem_limit_bytes=_HW["vmem_limit_bytes"])


def _tile(dim, target, align):
    """Largest tile <= target that divides `dim` and is `align`-aligned;
    falls back to 8-alignment, then to the full dim (always legal)."""
    if dim <= target:
        return dim
    for a in (align, 8):
        t = (min(target, dim) // a) * a
        while t >= a:
            if dim % t == 0:
                return t
            t -= a
    return dim


def _layernorm(y, gamma, beta, eps):
    mu = jnp.mean(y, axis=-1, keepdims=True)
    var = jnp.mean(jnp.square(y - mu), axis=-1, keepdims=True)
    return (y - mu) * jax.lax.rsqrt(var + eps) * gamma + beta


# ----------------------------------------------------------------------------
# Full-width dense projection:  [M, K] x [K, N] + b -> [M, N]   (bf16 out)
# ----------------------------------------------------------------------------
def _dense_kernel(x_ref, w_ref, b_ref, o_ref):
    y = jnp.dot(x_ref[...], w_ref[...], preferred_element_type=jnp.float32)
    o_ref[...] = (y + b_ref[...]).astype(o_ref.dtype)


def dense(x, w, b, *, row_tile=512, col_tile=512):
    """x: [M, K] bf16, w: [K, N] bf16, b: [1, N] f32 -> x @ w + b, bf16."""
    M, K = x.shape
    N = w.shape[1]
    tm = _tile(M, row_tile, 16)
    tn = _tile(N, col_tile, 128)
    grid = (M // tm, N // tn)
    flops = 2 * M * K * N
    bytes_accessed = 2 * (M * K + M * N) + 2 * K * N * grid[0]
    return pl.pallas_call(
        _dense_kernel,
        out_shape=jax.ShapeDtypeStruct((M, N), x.dtype),
        grid=grid,
        in_specs=[
            pl.BlockSpec((tm, K), lambda mi, ni: (mi, 0)),
            pl.BlockSpec((K, tn), lambda mi, ni: (0, ni)),
            pl.BlockSpec((1, tn), lambda mi, ni: (0, ni)),
        ],
        out_specs=pl.BlockSpec((tm, tn), lambda mi, ni: (mi, ni)),
        compiler_params=_mosaic_params(("parallel", "parallel")),
        cost_estimate=pl.CostEstimate(flops=flops, transcendentals=0,
                                      bytes_accessed=bytes_accessed),
    )(x, w, b)


# ----------------------------------------------------------------------------
# Flash-style attention (online softmax, KV-tiled), head-major layout
# ----------------------------------------------------------------------------
def _flash_attn_kernel(q_ref, k_ref, v_ref, o_ref, m_sc, l_sc, acc_sc, *, exp_dtype):
    ki = pl.program_id(3)

    @pl.when(ki == 0)
    def _():
        m_sc[...] = jnp.full(m_sc.shape, -jnp.inf, dtype=m_sc.dtype)
        l_sc[...] = jnp.zeros_like(l_sc)
        acc_sc[...] = jnp.zeros_like(acc_sc)

    # 1/sqrt(D) is folded into wq/bq at trace time — no per-step scaling here.
    # Contract matching minor dims directly — no in-kernel k.T relayout.
    s = jax.lax.dot_general(q_ref[...], k_ref[...], (((1,), (1,)), ((), ())),
                            preferred_element_type=jnp.float32)          # [tq, tkv]

    m_prev = m_sc[...]
    m_new = jnp.maximum(m_prev, jnp.max(s, axis=-1, keepdims=True))
    alpha = jnp.exp(m_prev - m_new)                     # [tq, 1]; cheap, keep f32
    # Dominant exponential ([tq, tkv]) in bf16 on v6e/v7x (EUP-bound), f32 on v5e.
    p = jnp.exp((s - m_new).astype(exp_dtype))
    l_sc[...] = alpha * l_sc[...] + jnp.sum(p.astype(jnp.float32), axis=-1,
                                            keepdims=True)
    acc_sc[...] = alpha * acc_sc[...] + jnp.dot(
        p.astype(v_ref.dtype), v_ref[...], preferred_element_type=jnp.float32)
    m_sc[...] = m_new

    @pl.when(ki == pl.num_programs(3) - 1)
    def _():
        # Exact divide (runs once per q tile; negligible cost).
        inv_l = pl.reciprocal(l_sc[...], approx=False)
        o_ref[...] = (acc_sc[...] * inv_l).astype(o_ref.dtype)


def flash_attention(q, kv, *, q_tile=512, kv_tile=None):
    """q: [B, NH, Sq, D]; kv: [B, 2*NH, Skv, D] (K heads then V heads) -> [B, NH, Sq, D]."""
    B, NH, Sq, D = q.shape
    assert kv.shape[1] == 2 * NH
    Skv = kv.shape[2]
    if kv_tile is None:
        kv_tile = _HW["kv_tile"]
    tq = _tile(Sq, q_tile, 16)
    tkv = _tile(Skv, kv_tile, 128)
    grid = (B, NH, Sq // tq, Skv // tkv)
    kern = functools.partial(_flash_attn_kernel, exp_dtype=_HW["exp_dtype"])
    flops = 4 * B * NH * Sq * Skv * D
    bytes_accessed = 2 * (2 * B * NH * Sq * D + 2 * B * NH * Skv * D * (Sq // tq))
    return pl.pallas_call(
        kern,
        out_shape=jax.ShapeDtypeStruct((B, NH, Sq, D), q.dtype),
        grid=grid,
        in_specs=[
            pl.BlockSpec((None, None, tq, D), lambda b, h, qi, ki: (b, h, qi, 0)),
            pl.BlockSpec((None, None, tkv, D), lambda b, h, qi, ki: (b, h, ki, 0)),
            pl.BlockSpec((None, None, tkv, D), lambda b, h, qi, ki: (b, NH + h, ki, 0)),
        ],
        out_specs=pl.BlockSpec((None, None, tq, D), lambda b, h, qi, ki: (b, h, qi, 0)),
        scratch_shapes=[
            pltpu.VMEM((tq, 1), jnp.float32),   # running max m
            pltpu.VMEM((tq, 1), jnp.float32),   # running denom l
            pltpu.VMEM((tq, D), jnp.float32),   # output accumulator
        ],
        compiler_params=_mosaic_params(
            ("parallel", "parallel", "parallel", "arbitrary")),
        cost_estimate=pl.CostEstimate(flops=flops, transcendentals=B * NH * Sq * Skv,
                                      bytes_accessed=bytes_accessed),
    )(q, kv, kv)


# ----------------------------------------------------------------------------
# Attention output: single [M,H]x[H,H] dense + bias + residual + LayerNorm
# ----------------------------------------------------------------------------
def _dense_res_ln_kernel(x_ref, w_ref, b_ref, res_ref, g_ref, be_ref, o_ref, *, eps):
    y = jnp.dot(x_ref[...], w_ref[...], preferred_element_type=jnp.float32)
    y = y + b_ref[...] + res_ref[...].astype(jnp.float32)
    o_ref[...] = _layernorm(y, g_ref[...], be_ref[...], eps).astype(o_ref.dtype)


def dense_residual_layernorm(x, w, b, residual, gamma, beta, *, row_tile=512):
    """LayerNorm(x @ w + b + residual).  x: [M, K] bf16, w: [K, H] bf16."""
    M, K = x.shape
    H = w.shape[1]
    tm = _tile(M, row_tile, 16)
    grid = (M // tm,)
    flops = 2 * M * K * H
    bytes_accessed = 2 * (M * K + 2 * M * H) + 2 * K * H * grid[0]
    return pl.pallas_call(
        functools.partial(_dense_res_ln_kernel, eps=LN_EPS),
        out_shape=jax.ShapeDtypeStruct((M, H), residual.dtype),
        grid=grid,
        in_specs=[
            pl.BlockSpec((tm, K), lambda mi: (mi, 0)),
            pl.BlockSpec((K, H), lambda mi: (0, 0)),
            pl.BlockSpec((1, H), lambda mi: (0, 0)),
            pl.BlockSpec((tm, H), lambda mi: (mi, 0)),
            pl.BlockSpec((1, H), lambda mi: (0, 0)),
            pl.BlockSpec((1, H), lambda mi: (0, 0)),
        ],
        out_specs=pl.BlockSpec((tm, H), lambda mi: (mi, 0)),
        compiler_params=_mosaic_params(("parallel",)),
        cost_estimate=pl.CostEstimate(flops=flops, transcendentals=0,
                                      bytes_accessed=bytes_accessed),
    )(x, w, b, residual, gamma, beta)


# ----------------------------------------------------------------------------
# Fused feed_forward_chunk: LayerNorm(gelu(x @ w1 + b1) @ w2 + b2 + x)
# Rows (parallel) x intermediate dim (arbitrary, f32 accumulator).
# ----------------------------------------------------------------------------
def _ffn_kernel(x_ref, w1_ref, b1_ref, w2_ref, b2_ref, g_ref, be_ref, o_ref, acc_ref,
                *, eps):
    ii = pl.program_id(1)

    @pl.when(ii == 0)
    def _():
        acc_ref[...] = jnp.zeros_like(acc_ref)

    h = (jnp.dot(x_ref[...], w1_ref[...], preferred_element_type=jnp.float32)
         + b1_ref[...])
    # TODO(synk): HF-BERT default hidden_act is exact (erf) GELU; tanh approximation
    #             used here as it lowers cleanly in Mosaic.
    h = jax.nn.gelu(h, approximate=True)
    acc_ref[...] += jnp.dot(h.astype(x_ref.dtype), w2_ref[...],
                            preferred_element_type=jnp.float32)

    @pl.when(ii == pl.num_programs(1) - 1)
    def _():
        y = acc_ref[...] + b2_ref[...] + x_ref[...].astype(jnp.float32)
        o_ref[...] = _layernorm(y, g_ref[...], be_ref[...], eps).astype(o_ref.dtype)


def feed_forward(x, w1, b1, w2, b2, gamma, beta, *, row_tile=None, inter_tile=1024):
    M, H = x.shape
    I = w1.shape[1]
    if row_tile is None:
        row_tile = _HW["ffn_row_tile"]        # 2048 on v5e/v6e, 1024 on v7x
    tm = _tile(M, row_tile, 16)
    ti = _tile(I, inter_tile, 128)
    grid = (M // tm, I // ti)
    flops = 4 * M * H * I
    bytes_accessed = 2 * (2 * M * H + 2 * H * I * (M // tm))
    return pl.pallas_call(
        functools.partial(_ffn_kernel, eps=LN_EPS),
        out_shape=jax.ShapeDtypeStruct((M, H), x.dtype),
        grid=grid,
        in_specs=[
            pl.BlockSpec((tm, H), lambda mi, ii: (mi, 0)),
            pl.BlockSpec((H, ti), lambda mi, ii: (0, ii)),
            pl.BlockSpec((1, ti), lambda mi, ii: (0, ii)),
            pl.BlockSpec((ti, H), lambda mi, ii: (ii, 0)),
            pl.BlockSpec((1, H), lambda mi, ii: (0, 0)),
            pl.BlockSpec((1, H), lambda mi, ii: (0, 0)),
            pl.BlockSpec((1, H), lambda mi, ii: (0, 0)),
        ],
        out_specs=pl.BlockSpec((tm, H), lambda mi, ii: (mi, 0)),
        scratch_shapes=[pltpu.VMEM((tm, H), jnp.float32)],
        compiler_params=_mosaic_params(("parallel", "arbitrary")),
        cost_estimate=pl.CostEstimate(flops=flops, transcendentals=M * I,
                                      bytes_accessed=bytes_accessed),
    )(x, w1, b1, w2, b2, gamma, beta)


# ----------------------------------------------------------------------------
# GodCasterLayer forward (wrapper / glue)
# ----------------------------------------------------------------------------
def godcaster_layer_forward(params, hidden_states, video, text, num_heads):
    B, S, H = hidden_states.shape
    D = H // num_heads
    out_dtype = hidden_states.dtype
    scale = 1.0 / (D ** 0.5)

    hs = hidden_states.astype(COMPUTE_DTYPE)
    memory = jnp.concatenate(
        [hs, video.astype(COMPUTE_DTYPE), text.astype(COMPUTE_DTYPE)], axis=1)
    Skv = memory.shape[1]

    # Trace-time weight prep only (tiny, one-off). 1/sqrt(D) folded into wq/bq.
    wq = (params["wq"].astype(jnp.float32) * scale).astype(COMPUTE_DTYPE)   # [H, H]
    bq = (params["bq"].astype(jnp.float32) * scale).reshape(1, H)
    wkv = jnp.concatenate([params["wk"], params["wv"]],
                          axis=1).astype(COMPUTE_DTYPE)                     # [H, 2H]
    bkv = jnp.concatenate([params["bk"], params["bv"]]
                          ).astype(jnp.float32).reshape(1, 2 * H)

    # --- GodCasterSelfAttention (joint attention over [hidden; video; text]) ----
    # Full-width, lane-dense projections: full MXU output width, unmasked stores.
    q2 = dense(hs.reshape(B * S, H), wq, bq)                  # [B*S, H]
    kv2 = dense(memory.reshape(B * Skv, H), wkv, bkv)         # [B*Skv, 2H]

    # Cheap head-major relayout (pure XLA transpose outside kernels) so the flash
    # kernel keeps full-last-dim D blocks (the layout Mosaic pipelines best).
    q4 = q2.reshape(B, S, num_heads, D).transpose(0, 2, 1, 3)            # [B, NH, S, D]
    kv4 = kv2.reshape(B, Skv, 2 * num_heads, D).transpose(0, 2, 1, 3)    # [B, 2NH, Skv, D]

    ctx = flash_attention(q4, kv4)                            # [B, NH, S, D]
    ctx2 = ctx.transpose(0, 2, 1, 3).reshape(B * S, H)        # head-major features

    # Single K=H dense + bias + residual + LayerNorm.
    attn_out = dense_residual_layernorm(
        ctx2,
        params["wo"].astype(COMPUTE_DTYPE),
        params["bo"].astype(jnp.float32).reshape(1, H),
        hs.reshape(B * S, H),
        params["g_attn"].astype(jnp.float32).reshape(1, H),
        params["b_attn"].astype(jnp.float32).reshape(1, H))              # [B*S, H]

    # --- feed_forward_chunk (Intermediate + Output), chunk_size_feed_forward = 0 ---
    layer = feed_forward(
        attn_out,
        params["w1"].astype(COMPUTE_DTYPE),
        params["b1"].astype(jnp.float32).reshape(1, -1),
        params["w2"].astype(COMPUTE_DTYPE),
        params["b2"].astype(jnp.float32).reshape(1, H),
        params["g_out"].astype(jnp.float32).reshape(1, H),
        params["b_out"].astype(jnp.float32).reshape(1, H))

    return (layer.reshape(B, S, H).astype(out_dtype),)


def init_params(key, hidden, intermediate):
    ks = jax.random.split(key, 8)
    std = 0.02
    return {
        "wq": jax.random.normal(ks[0], (hidden, hidden), jnp.float32) * std,
        "bq": jnp.zeros((hidden,), jnp.float32),
        "wk": jax.random.normal(ks[1], (hidden, hidden), jnp.float32) * std,
        "bk": jnp.zeros((hidden,), jnp.float32),
        "wv": jax.random.normal(ks[2], (hidden, hidden), jnp.float32) * std,
        "bv": jnp.zeros((hidden,), jnp.float32),
        "wo": jax.random.normal(ks[3], (hidden, hidden), jnp.float32) * std,
        "bo": jnp.zeros((hidden,), jnp.float32),
        "g_attn": jnp.ones((hidden,), jnp.float32),
        "b_attn": jnp.zeros((hidden,), jnp.float32),
        "w1": jax.random.normal(ks[4], (hidden, intermediate), jnp.float32) * std,
        "b1": jnp.zeros((intermediate,), jnp.float32),
        "w2": jax.random.normal(ks[5], (intermediate, hidden), jnp.float32) * std,
        "b2": jnp.zeros((hidden,), jnp.float32),
        "g_out": jnp.ones((hidden,), jnp.float32),
        "b_out": jnp.zeros((hidden,), jnp.float32),
    }


if __name__ == "__main__":
    # small config: batch=2, seq=8, video_len=8, text_len=8, hidden=32,
    # heads=4 (head_dim=8), intermediate=64, chunk_size_feed_forward=0,
    # is_decoder=False, no masks / past_key_value.
    B, S, SV, ST, H, NH, I = 2, 8, 8, 8, 32, 4, 64

    key = jax.random.PRNGKey(0)
    k_param, k_h, k_v, k_t = jax.random.split(key, 4)

    params = init_params(k_param, H, I)
    hidden_states = jax.random.normal(k_h, (B, S, H), jnp.float32)
    video = jax.random.normal(k_v, (B, SV, H), jnp.float32)
    text = jax.random.normal(k_t, (B, ST, H), jnp.float32)

    fwd = jax.jit(functools.partial(godcaster_layer_forward, num_heads=NH))
    outputs = fwd(params, hidden_states, video, text)
    layer_output = jax.block_until_ready(outputs[0])

    assert layer_output.shape == (B, S, H)
    assert jnp.isfinite(layer_output).all()
    print("KERNEL_OK")
</pallas_src>

<mosaic_0001>
module attributes {stable_mosaic.version = 11 : i64} {
  func.func @_dense_kernel(%arg0: i32, %arg1: i32, %arg2: memref<16x32xbf16, #tpu.memory_space<vmem>>, %arg3: memref<32x32xbf16, #tpu.memory_space<vmem>>, %arg4: memref<1x32xf32, #tpu.memory_space<vmem>>, %arg5: memref<16x32xbf16, #tpu.memory_space<vmem>>) attributes {dimension_semantics = [#tpu.dimension_semantics<parallel>, #tpu.dimension_semantics<parallel>], iteration_bounds = array<i64: 1, 1>, scalar_prefetch = 0 : i64, scratch_operands = 0 : i64, tpu.core_type = #tpu.core_type<tc>, window_params = [{transform_indices = @transform_0, window_bounds = array<i64: 16, 32>}, {transform_indices = @transform_1, window_bounds = array<i64: 32, 32>}, {transform_indices = @transform_2, window_bounds = array<i64: 1, 32>}, {transform_indices = @transform_3, window_bounds = array<i64: 16, 32>}]} {
    %c0 = arith.constant 0 : index
    %c0_0 = arith.constant 0 : index
    %0 = vector.load %arg2[%c0, %c0_0] : memref<16x32xbf16, #tpu.memory_space<vmem>>, vector<16x32xbf16>
    %c0_1 = arith.constant 0 : index
    %c0_2 = arith.constant 0 : index
    %1 = vector.load %arg3[%c0_1, %c0_2] : memref<32x32xbf16, #tpu.memory_space<vmem>>, vector<32x32xbf16>
    %cst = arith.constant dense<0.000000e+00> : vector<16x32xf32>
    %2 = tpu.matmul %0, %1, %cst {dimension_numbers = #tpu.dot_dimension_numbers<[1], [0], [0], [1], [0, 0, 1, 1], [], []>} : vector<16x32xbf16>, vector<32x32xbf16>, vector<16x32xf32> -> vector<16x32xf32>
    %c0_3 = arith.constant 0 : index
    %c0_4 = arith.constant 0 : index
    %3 = vector.load %arg4[%c0_3, %c0_4] : memref<1x32xf32, #tpu.memory_space<vmem>>, vector<1x32xf32>
    %4 = vector.broadcast %3 : vector<1x32xf32> to vector<16x32xf32>
    %5 = arith.addf %2, %4 : vector<16x32xf32>
    %6 = arith.truncf %5 : vector<16x32xf32> to vector<16x32xbf16>
    %c0_5 = arith.constant 0 : index
    %c0_6 = arith.constant 0 : index
    %7 = vector.load %arg5[%c0_5, %c0_6] : memref<16x32xbf16, #tpu.memory_space<vmem>>, vector<16x32xbf16>
    tpu.vector_store %arg5[%c0_5, %c0_6], %6 {strides = array<i32>} : memref<16x32xbf16, #tpu.memory_space<vmem>>, vector<16x32xbf16>,
    return
  }
  func.func @transform_0(%arg0: i32, %arg1: i32) -> (i32, i32) {
    %c0_i32 = arith.constant 0 : i32
    %c0_i32_0 = arith.constant 0 : i32
    return %arg0, %c0_i32 : i32, i32
  }
  func.func @transform_1(%arg0: i32, %arg1: i32) -> (i32, i32) {
    %c0_i32 = arith.constant 0 : i32
    %c0_i32_0 = arith.constant 0 : i32
    return %c0_i32, %arg1 : i32, i32
  }
  func.func @transform_2(%arg0: i32, %arg1: i32) -> (i32, i32) {
    %c0_i32 = arith.constant 0 : i32
    %c0_i32_0 = arith.constant 0 : i32
    return %c0_i32, %arg1 : i32, i32
  }
  func.func @transform_3(%arg0: i32, %arg1: i32) -> (i32, i32) {
    %c0_i32 = arith.constant 0 : i32
    return %arg0, %arg1 : i32, i32
  }
}

module attributes {stable_mosaic.version = 11 : i64} {
  func.func @_dense_kernel(%arg0: i32, %arg1: i32, %arg2: memref<48x32xbf16, #tpu.memory_space<vmem>>, %arg3: memref<32x64xbf16, #tpu.memory_space<vmem>>, %arg4: memref<1x64xf32, #tpu.memory_space<vmem>>, %arg5: memref<48x64xbf16, #tpu.memory_space<vmem>>) attributes {dimension_semantics = [#tpu.dimension_semantics<parallel>, #tpu.dimension_semantics<parallel>], iteration_bounds = array<i64: 1, 1>, scalar_prefetch = 0 : i64, scratch_operands = 0 : i64, tpu.core_type = #tpu.core_type<tc>, window_params = [{transform_indices = @transform_0, window_bounds = array<i64: 48, 32>}, {transform_indices = @transform_1, window_bounds = array<i64: 32, 64>}, {transform_indices = @transform_2, window_bounds = array<i64: 1, 64>}, {transform_indices = @transform_3, window_bounds = array<i64: 48, 64>}]} {
    %c0 = arith.constant 0 : index
    %c0_0 = arith.constant 0 : index
    %0 = vector.load %arg2[%c0, %c0_0] : memref<48x32xbf16, #tpu.memory_space<vmem>>, vector<48x32xbf16>
    %c0_1 = arith.constant 0 : index
    %c0_2 = arith.constant 0 : index
    %1 = vector.load %arg3[%c0_1, %c0_2] : memref<32x64xbf16, #tpu.memory_space<vmem>>, vector<32x64xbf16>
    %cst = arith.constant dense<0.000000e+00> : vector<48x64xf32>
    %2 = tpu.matmul %0, %1, %cst {dimension_numbers = #tpu.dot_dimension_numbers<[1], [0], [0], [1], [0, 0, 1, 1], [], []>} : vector<48x32xbf16>, vector<32x64xbf16>, vector<48x64xf32> -> vector<48x64xf32>
    %c0_3 = arith.constant 0 : index
    %c0_4 = arith.constant 0 : index
    %3 = vector.load %arg4[%c0_3, %c0_4] : memref<1x64xf32, #tpu.memory_space<vmem>>, vector<1x64xf32>
    %4 = vector.broadcast %3 : vector<1x64xf32> to vector<48x64xf32>
    %5 = arith.addf %2, %4 : vector<48x64xf32>
    %6 = arith.truncf %5 : vector<48x64xf32> to vector<48x64xbf16>
    %c0_5 = arith.constant 0 : index
    %c0_6 = arith.constant 0 : index
    %7 = vector.load %arg5[%c0_5, %c0_6] : memref<48x64xbf16, #tpu.memory_space<vmem>>, vector<48x64xbf16>
    tpu.vector_store %arg5[%c0_5, %c0_6], %6 {strides = array<i32>} : memref<48x64xbf16, #tpu.memory_space<vmem>>, vector<48x64xbf16>,
    return
  }
  func.func @transform_0(%arg0: i32, %arg1: i32) -> (i32, i32) {
    %c0_i32 = arith.constant 0 : i32
    %c0_i32_0 = arith.constant 0 : i32
    return %arg0, %c0_i32 : i32, i32
  }
  func.func @transform_1(%arg0: i32, %arg1: i32) -> (i32, i32) {
    %c0_i32 = arith.constant 0 : i32
    %c0_i32_0 = arith.constant 0 : i32
    return %c0_i32, %arg1 : i32, i32
  }
  func.func @transform_2(%arg0: i32, %arg1: i32) -> (i32, i32) {
    %c0_i32 = arith.constant 0 : i32
    %c0_i32_0 = arith.constant 0 : i32
    return %c0_i32, %arg1 : i32, i32
  }
  func.func @transform_3(%arg0: i32, %arg1: i32) -> (i32, i32) {
    %c0_i32 = arith.constant 0 : i32
    return %arg0, %arg1 : i32, i32
  }
}

module attributes {stable_mosaic.version = 11 : i64} {
  func.func @_flash_attn_kernel(%arg0: i32, %arg1: i32, %arg2: i32, %arg3: i32, %arg4: memref<1x1x8x8xbf16, #tpu.memory_space<vmem>>, %arg5: memref<1x1x24x8xbf16, #tpu.memory_space<vmem>>, %arg6: memref<1x1x24x8xbf16, #tpu.memory_space<vmem>>, %arg7: memref<1x1x8x8xbf16, #tpu.memory_space<vmem>>, %arg8: memref<8x1xf32, #tpu.memory_space<vmem>>, %arg9: memref<8x1xf32, #tpu.memory_space<vmem>>, %arg10: memref<8x8xf32, #tpu.memory_space<vmem>>) attributes {dimension_semantics = [#tpu.dimension_semantics<parallel>, #tpu.dimension_semantics<parallel>, #tpu.dimension_semantics<parallel>, #tpu.dimension_semantics<arbitrary>], iteration_bounds = array<i64: 2, 4, 1, 1>, scalar_prefetch = 0 : i64, scratch_operands = 3 : i64, tpu.core_type = #tpu.core_type<tc>, window_params = [{transform_indices = @transform_0, window_bounds = array<i64: 1, 1, 8, 8>}, {transform_indices = @transform_1, window_bounds = array<i64: 1, 1, 24, 8>}, {transform_indices = @transform_2, window_bounds = array<i64: 1, 1, 24, 8>}, {transform_indices = @transform_3, window_bounds = array<i64: 1, 1, 8, 8>}]} {
    %c0_i32 = arith.constant 0 : i32
    %0 = arith.cmpi eq, %arg3, %c0_i32 : i32
    %1 = arith.extui %0 : i1 to i32
    %c0_i32_0 = arith.constant 0 : i32
    %2 = arith.cmpi ne, %1, %c0_i32_0 : i32
    scf.if %2 {
      %cst_29 = arith.constant 0xFF800000 : f32
      %36 = vector.broadcast %cst_29 : f32 to vector<8x1xf32>
      %c0_30 = arith.constant 0 : index
      %c0_31 = arith.constant 0 : index
      %37 = vector.load %arg8[%c0_30, %c0_31] : memref<8x1xf32, #tpu.memory_space<vmem>>, vector<8x1xf32>
      tpu.vector_store %arg8[%c0_30, %c0_31], %36 {strides = array<i32>} : memref<8x1xf32, #tpu.memory_space<vmem>>, vector<8x1xf32>,
      %cst_32 = arith.constant 0.000000e+00 : f32
      %38 = vector.broadcast %cst_32 : f32 to vector<8x1xf32>
      %c0_33 = arith.constant 0 : index
      %c0_34 = arith.constant 0 : index
      %39 = vector.load %arg9[%c0_33, %c0_34] : memref<8x1xf32, #tpu.memory_space<vmem>>, vector<8x1xf32>
      tpu.vector_store %arg9[%c0_33, %c0_34], %38 {strides = array<i32>} : memref<8x1xf32, #tpu.memory_space<vmem>>, vector<8x1xf32>,
      %cst_35 = arith.constant 0.000000e+00 : f32
      %40 = vector.broadcast %cst_35 : f32 to vector<8x8xf32>
      %c0_36 = arith.constant 0 : index
      %c0_37 = arith.constant 0 : index
      %41 = vector.load %arg10[%c0_36, %c0_37] : memref<8x8xf32, #tpu.memory_space<vmem>>, vector<8x8xf32>
      tpu.vector_store %arg10[%c0_36, %c0_37], %40 {strides = array<i32>} : memref<8x8xf32, #tpu.memory_space<vmem>>, vector<8x8xf32>,
    } else {
    }
    %c0 = arith.constant 0 : index
    %c0_1 = arith.constant 0 : index
    %c0_2 = arith.constant 0 : index
    %c0_3 = arith.constant 0 : index
    %3 = vector.load %arg4[%c0, %c0_1, %c0_2, %c0_3] : memref<1x1x8x8xbf16, #tpu.memory_space<vmem>>, vector<1x1x8x8xbf16>
    %4 = vector.shape_cast %3 : vector<1x1x8x8xbf16> to vector<8x8xbf16>
    %c0_4 = arith.constant 0 : index
    %c0_5 = arith.constant 0 : index
    %c0_6 = arith.constant 0 : index
    %c0_7 = arith.constant 0 : index
    %5 = vector.load %arg5[%c0_4, %c0_5, %c0_6, %c0_7] : memref<1x1x24x8xbf16, #tpu.memory_space<vmem>>, vector<1x1x24x8xbf16>
    %6 = vector.shape_cast %5 : vector<1x1x24x8xbf16> to vector<24x8xbf16>
    %cst = arith.constant dense<0.000000e+00> : vector<8x24xf32>
    %7 = tpu.matmul %4, %6, %cst {dimension_numbers = #tpu.dot_dimension_numbers<[1], [1], [0], [0], [0, 0, 1, 0], [], []>} : vector<8x8xbf16>, vector<24x8xbf16>, vector<8x24xf32> -> vector<8x24xf32>
    %c0_8 = arith.constant 0 : index
    %c0_9 = arith.constant 0 : index
    %8 = vector.load %arg8[%c0_8, %c0_9] : memref<8x1xf32, #tpu.memory_space<vmem>>, vector<8x1xf32>
    %cst_10 = arith.constant dense<0xFF800000> : vector<8xf32>
    %9 = vector.multi_reduction <maximumf>, %7, %cst_10 [1] : vector<8x24xf32> to vector<8xf32>
    %10 = vector.shape_cast %9 : vector<8xf32> to vector<8x1xf32>
    %11 = arith.maximumf %8, %10 : vector<8x1xf32>
    %12 = arith.subf %8, %11 : vector<8x1xf32>
    %13 = math.exp %12 : vector<8x1xf32>
    %14 = vector.broadcast %11 : vector<8x1xf32> to vector<8x24xf32>
    %15 = arith.subf %7, %14 : vector<8x24xf32>
    %16 = math.exp %15 : vector<8x24xf32>
    %c0_11 = arith.constant 0 : index
    %c0_12 = arith.constant 0 : index
    %17 = vector.load %arg9[%c0_11, %c0_12] : memref<8x1xf32, #tpu.memory_space<vmem>>, vector<8x1xf32>
    %18 = arith.mulf %13, %17 : vector<8x1xf32>
    %cst_13 = arith.constant dense<0.000000e+00> : vector<8xf32>
    %19 = vector.multi_reduction <add>, %16, %cst_13 [1] : vector<8x24xf32> to vector<8xf32>
    %20 = vector.shape_cast %19 : vector<8xf32> to vector<8x1xf32>
    %21 = arith.addf %18, %20 : vector<8x1xf32>
    %c0_14 = arith.constant 0 : index
    %c0_15 = arith.constant 0 : index
    %22 = vector.load %arg9[%c0_14, %c0_15] : memref<8x1xf32, #tpu.memory_space<vmem>>, vector<8x1xf32>
    tpu.vector_store %arg9[%c0_14, %c0_15], %21 {strides = array<i32>} : memref<8x1xf32, #tpu.memory_space<vmem>>, vector<8x1xf32>,
    %c0_16 = arith.constant 0 : index
    %c0_17 = arith.constant 0 : index
    %23 = vector.load %arg10[%c0_16, %c0_17] : memref<8x8xf32, #tpu.memory_space<vmem>>, vector<8x8xf32>
    %24 = vector.broadcast %13 : vector<8x1xf32> to vector<8x8xf32>
    %25 = arith.mulf %24, %23 : vector<8x8xf32>
    %26 = arith.truncf %16 : vector<8x24xf32> to vector<8x24xbf16>
    %c0_18 = arith.constant 0 : index
    %c0_19 = arith.constant 0 : index
    %c0_20 = arith.constant 0 : index
    %c0_21 = arith.constant 0 : index
    %27 = vector.load %arg6[%c0_18, %c0_19, %c0_20, %c0_21] : memref<1x1x24x8xbf16, #tpu.memory_space<vmem>>, vector<1x1x24x8xbf16>
    %28 = vector.shape_cast %27 : vector<1x1x24x8xbf16> to vector<24x8xbf16>
    %cst_22 = arith.constant dense<0.000000e+00> : vector<8x8xf32>
    %29 = tpu.matmul %26, %28, %cst_22 {dimension_numbers = #tpu.dot_dimension_numbers<[1], [0], [0], [1], [0, 0, 1, 1], [], []>} : vector<8x24xbf16>, vector<24x8xbf16>, vector<8x8xf32> -> vector<8x8xf32>
    %30 = arith.addf %25, %29 : vector<8x8xf32>
    %c0_23 = arith.constant 0 : index
    %c0_24 = arith.constant 0 : index
    %31 = vector.load %arg10[%c0_23, %c0_24] : memref<8x8xf32, #tpu.memory_space<vmem>>, vector<8x8xf32>
    tpu.vector_store %arg10[%c0_23, %c0_24], %30 {strides = array<i32>} : memref<8x8xf32, #tpu.memory_space<vmem>>, vector<8x8xf32>,
    %c0_25 = arith.constant 0 : index
    %c0_26 = arith.constant 0 : index
    %32 = vector.load %arg8[%c0_25, %c0_26] : memref<8x1xf32, #tpu.memory_space<vmem>>, vector<8x1xf32>
    tpu.vector_store %arg8[%c0_25, %c0_26], %11 {strides = array<i32>} : memref<8x1xf32, #tpu.memory_space<vmem>>, vector<8x1xf32>,
    %c0_i32_27 = arith.constant 0 : i32
    %33 = arith.cmpi eq, %arg3, %c0_i32_27 : i32
    %34 = arith.extui %33 : i1 to i32
    %c0_i32_28 = arith.constant 0 : i32
    %35 = arith.cmpi ne, %34, %c0_i32_28 : i32
    scf.if %35 {
      %c0_29 = arith.constant 0 : index
      %c0_30 = arith.constant 0 : index
      %36 = vector.load %arg9[%c0_29, %c0_30] : memref<8x1xf32, #tpu.memory_space<vmem>>, vector<8x1xf32>
      %37 = tpu.reciprocal %36 : vector<8x1xf32> -> vector<8x1xf32>
      %c0_31 = arith.constant 0 : index
      %c0_32 = arith.constant 0 : index
      %38 = vector.load %arg10[%c0_31, %c0_32] : memref<8x8xf32, #tpu.memory_space<vmem>>, vector<8x8xf32>
      %39 = vector.broadcast %37 : vector<8x1xf32> to vector<8x8xf32>
      %40 = arith.mulf %38, %39 : vector<8x8xf32>
      %41 = arith.truncf %40 : vector<8x8xf32> to vector<8x8xbf16>
      %c0_33 = arith.constant 0 : index
      %c0_34 = arith.constant 0 : index
      %c0_35 = arith.constant 0 : index
      %c0_36 = arith.constant 0 : index
      %42 = vector.load %arg7[%c0_33, %c0_34, %c0_35, %c0_36] : memref<1x1x8x8xbf16, #tpu.memory_space<vmem>>, vector<1x1x8x8xbf16>
      %43 = vector.shape_cast %42 : vector<1x1x8x8xbf16> to vector<8x8xbf16>
      %44 = vector.shape_cast %41 : vector<8x8xbf16> to vector<1x1x8x8xbf16>
      tpu.vector_store %arg7[%c0_33, %c0_34, %c0_35, %c0_36], %44 {strides = array<i32>} : memref<1x1x8x8xbf16, #tpu.memory_space<vmem>>, vector<1x1x8x8xbf16>,
    } else {
    }
    return
  }
  func.func @transform_0(%arg0: i32, %arg1: i32, %arg2: i32, %arg3: i32) -> (i32, i32, i32, i32) {
    %c0_i32 = arith.constant 0 : i32
    %c0_i32_0 = arith.constant 0 : i32
    return %arg0, %arg1, %arg2, %c0_i32 : i32, i32, i32, i32
  }
  func.func @transform_1(%arg0: i32, %arg1: i32, %arg2: i32, %arg3: i32) -> (i32, i32, i32, i32) {
    %c0_i32 = arith.constant 0 : i32
    %c0_i32_0 = arith.constant 0 : i32
    return %arg0, %arg1, %arg3, %c0_i32 : i32, i32, i32, i32
  }
  func.func @transform_2(%arg0: i32, %arg1: i32, %arg2: i32, %arg3: i32) -> (i32, i32, i32, i32) {
    %c4_i32 = arith.constant 4 : i32
    %0 = arith.addi %c4_i32, %arg1 : i32
    %c0_i32 = arith.constant 0 : i32
    %c0_i32_0 = arith.constant 0 : i32
    return %arg0, %0, %arg3, %c0_i32 : i32, i32, i32, i32
  }
  func.func @transform_3(%arg0: i32, %arg1: i32, %arg2: i32, %arg3: i32) -> (i32, i32, i32, i32) {
    %c0_i32 = arith.constant 0 : i32
    %c0_i32_0 = arith.constant 0 : i32
    return %arg0, %arg1, %arg2, %c0_i32 : i32, i32, i32, i32
  }
}

module attributes {stable_mosaic.version = 11 : i64} {
  func.func @_dense_res_ln_kernel(%arg0: i32, %arg1: memref<16x32xbf16, #tpu.memory_space<vmem>>, %arg2: memref<32x32xbf16, #tpu.memory_space<vmem>>, %arg3: memref<1x32xf32, #tpu.memory_space<vmem>>, %arg4: memref<16x32xbf16, #tpu.memory_space<vmem>>, %arg5: memref<1x32xf32, #tpu.memory_space<vmem>>, %arg6: memref<1x32xf32, #tpu.memory_space<vmem>>, %arg7: memref<16x32xbf16, #tpu.memory_space<vmem>>) attributes {dimension_semantics = [#tpu.dimension_semantics<parallel>], iteration_bounds = array<i64: 1>, scalar_prefetch = 0 : i64, scratch_operands = 0 : i64, tpu.core_type = #tpu.core_type<tc>, window_params = [{transform_indices = @transform_0, window_bounds = array<i64: 16, 32>}, {pipeline_mode = #tpu.pipeline_mode<synchronous>, transform_indices = @transform_1, window_bounds = array<i64: 32, 32>}, {pipeline_mode = #tpu.pipeline_mode<synchronous>, transform_indices = @transform_2, window_bounds = array<i64: 1, 32>}, {transform_indices = @transform_3, window_bounds = array<i64: 16, 32>}, {pipeline_mode = #tpu.pipeline_mode<synchronous>, transform_indices = @transform_4, window_bounds = array<i64: 1, 32>}, {pipeline_mode = #tpu.pipeline_mode<synchronous>, transform_indices = @transform_5, window_bounds = array<i64: 1, 32>}, {transform_indices = @transform_6, window_bounds = array<i64: 16, 32>}]} {
    %c0 = arith.constant 0 : index
    %c0_0 = arith.constant 0 : index
    %0 = vector.load %arg1[%c0, %c0_0] : memref<16x32xbf16, #tpu.memory_space<vmem>>, vector<16x32xbf16>
    %c0_1 = arith.constant 0 : index
    %c0_2 = arith.constant 0 : index
    %1 = vector.load %arg2[%c0_1, %c0_2] : memref<32x32xbf16, #tpu.memory_space<vmem>>, vector<32x32xbf16>
    %cst = arith.constant dense<0.000000e+00> : vector<16x32xf32>
    %2 = tpu.matmul %0, %1, %cst {dimension_numbers = #tpu.dot_dimension_numbers<[1], [0], [0], [1], [0, 0, 1, 1], [], []>} : vector<16x32xbf16>, vector<32x32xbf16>, vector<16x32xf32> -> vector<16x32xf32>
    %c0_3 = arith.constant 0 : index
    %c0_4 = arith.constant 0 : index
    %3 = vector.load %arg3[%c0_3, %c0_4] : memref<1x32xf32, #tpu.memory_space<vmem>>, vector<1x32xf32>
    %4 = vector.broadcast %3 : vector<1x32xf32> to vector<16x32xf32>
    %5 = arith.addf %2, %4 : vector<16x32xf32>
    %c0_5 = arith.constant 0 : index
    %c0_6 = arith.constant 0 : index
    %6 = vector.load %arg4[%c0_5, %c0_6] : memref<16x32xbf16, #tpu.memory_space<vmem>>, vector<16x32xbf16>
    %7 = arith.extf %6 : vector<16x32xbf16> to vector<16x32xf32>
    %8 = arith.addf %5, %7 : vector<16x32xf32>
    %c0_7 = arith.constant 0 : index
    %c0_8 = arith.constant 0 : index
    %9 = vector.load %arg5[%c0_7, %c0_8] : memref<1x32xf32, #tpu.memory_space<vmem>>, vector<1x32xf32>
    %c0_9 = arith.constant 0 : index
    %c0_10 = arith.constant 0 : index
    %10 = vector.load %arg6[%c0_9, %c0_10] : memref<1x32xf32, #tpu.memory_space<vmem>>, vector<1x32xf32>
    %cst_11 = arith.constant dense<0.000000e+00> : vector<16xf32>
    %11 = vector.multi_reduction <add>, %8, %cst_11 [1] : vector<16x32xf32> to vector<16xf32>
    %12 = vector.shape_cast %11 : vector<16xf32> to vector<16x1xf32>
    %cst_12 = arith.constant 3.200000e+01 : f32
    %13 = vector.broadcast %cst_12 : f32 to vector<16x1xf32>
    %14 = arith.divf %12, %13 : vector<16x1xf32>
    %15 = vector.broadcast %14 : vector<16x1xf32> to vector<16x32xf32>
    %16 = arith.subf %8, %15 : vector<16x32xf32>
    %17 = arith.mulf %16, %16 : vector<16x32xf32>
    %cst_13 = arith.constant dense<0.000000e+00> : vector<16xf32>
    %18 = vector.multi_reduction <add>, %17, %cst_13 [1] : vector<16x32xf32> to vector<16xf32>
    %19 = vector.shape_cast %18 : vector<16xf32> to vector<16x1xf32>
    %cst_14 = arith.constant 3.200000e+01 : f32
    %20 = vector.broadcast %cst_14 : f32 to vector<16x1xf32>
    %21 = arith.divf %19, %20 : vector<16x1xf32>
    %22 = vector.broadcast %14 : vector<16x1xf32> to vector<16x32xf32>
    %23 = arith.subf %8, %22 : vector<16x32xf32>
    %cst_15 = arith.constant 9.99999996E-13 : f32
    %24 = vector.broadcast %cst_15 : f32 to vector<16x1xf32>
    %25 = arith.addf %21, %24 : vector<16x1xf32>
    %26 = math.rsqrt %25 : vector<16x1xf32>
    %27 = vector.broadcast %26 : vector<16x1xf32> to vector<16x32xf32>
    %28 = arith.mulf %23, %27 : vector<16x32xf32>
    %29 = vector.broadcast %9 : vector<1x32xf32> to vector<16x32xf32>
    %30 = arith.mulf %28, %29 : vector<16x32xf32>
    %31 = vector.broadcast %10 : vector<1x32xf32> to vector<16x32xf32>
    %32 = arith.addf %30, %31 : vector<16x32xf32>
    %33 = arith.truncf %32 : vector<16x32xf32> to vector<16x32xbf16>
    %c0_16 = arith.constant 0 : index
    %c0_17 = arith.constant 0 : index
    %34 = vector.load %arg7[%c0_16, %c0_17] : memref<16x32xbf16, #tpu.memory_space<vmem>>, vector<16x32xbf16>
    tpu.vector_store %arg7[%c0_16, %c0_17], %33 {strides = array<i32>} : memref<16x32xbf16, #tpu.memory_space<vmem>>, vector<16x32xbf16>,
    return
  }
  func.func @transform_0(%arg0: i32) -> (i32, i32) {
    %c0_i32 = arith.constant 0 : i32
    %c0_i32_0 = arith.constant 0 : i32
    return %arg0, %c0_i32 : i32, i32
  }
  func.func @transform_1(%arg0: i32) -> (i32, i32) {
    %c0_i32 = arith.constant 0 : i32
    %c0_i32_0 = arith.constant 0 : i32
    %c0_i32_1 = arith.constant 0 : i32
    return %c0_i32, %c0_i32_0 : i32, i32
  }
  func.func @transform_2(%arg0: i32) -> (i32, i32) {
    %c0_i32 = arith.constant 0 : i32
    %c0_i32_0 = arith.constant 0 : i32
    %c0_i32_1 = arith.constant 0 : i32
    return %c0_i32, %c0_i32_0 : i32, i32
  }
  func.func @transform_3(%arg0: i32) -> (i32, i32) {
    %c0_i32 = arith.constant 0 : i32
    %c0_i32_0 = arith.constant 0 : i32
    return %arg0, %c0_i32 : i32, i32
  }
  func.func @transform_4(%arg0: i32) -> (i32, i32) {
    %c0_i32 = arith.constant 0 : i32
    %c0_i32_0 = arith.constant 0 : i32
    %c0_i32_1 = arith.constant 0 : i32
    return %c0_i32, %c0_i32_0 : i32, i32
  }
  func.func @transform_5(%arg0: i32) -> (i32, i32) {
    %c0_i32 = arith.constant 0 : i32
    %c0_i32_0 = arith.constant 0 : i32
    %c0_i32_1 = arith.constant 0 : i32
    return %c0_i32, %c0_i32_0 : i32, i32
  }
  func.func @transform_6(%arg0: i32) -> (i32, i32) {
    %c0_i32 = arith.constant 0 : i32
    %c0_i32_0 = arith.constant 0 : i32
    return %arg0, %c0_i32 : i32, i32
  }
}

module attributes {stable_mosaic.version = 11 : i64} {
  func.func @_ffn_kernel(%arg0: i32, %arg1: i32, %arg2: memref<16x32xbf16, #tpu.memory_space<vmem>>, %arg3: memref<32x64xbf16, #tpu.memory_space<vmem>>, %arg4: memref<1x64xf32, #tpu.memory_space<vmem>>, %arg5: memref<64x32xbf16, #tpu.memory_space<vmem>>, %arg6: memref<1x32xf32, #tpu.memory_space<vmem>>, %arg7: memref<1x32xf32, #tpu.memory_space<vmem>>, %arg8: memref<1x32xf32, #tpu.memory_space<vmem>>, %arg9: memref<16x32xbf16, #tpu.memory_space<vmem>>, %arg10: memref<16x32xf32, #tpu.memory_space<vmem>>) attributes {dimension_semantics = [#tpu.dimension_semantics<parallel>, #tpu.dimension_semantics<arbitrary>], iteration_bounds = array<i64: 1, 1>, scalar_prefetch = 0 : i64, scratch_operands = 1 : i64, tpu.core_type = #tpu.core_type<tc>, window_params = [{transform_indices = @transform_0, window_bounds = array<i64: 16, 32>}, {transform_indices = @transform_1, window_bounds = array<i64: 32, 64>}, {transform_indices = @transform_2, window_bounds = array<i64: 1, 64>}, {transform_indices = @transform_3, window_bounds = array<i64: 64, 32>}, {pipeline_mode = #tpu.pipeline_mode<synchronous>, transform_indices = @transform_4, window_bounds = array<i64: 1, 32>}, {pipeline_mode = #tpu.pipeline_mode<synchronous>, transform_indices = @transform_5, window_bounds = array<i64: 1, 32>}, {pipeline_mode = #tpu.pipeline_mode<synchronous>, transform_indices = @transform_6, window_bounds = array<i64: 1, 32>}, {transform_indices = @transform_7, window_bounds = array<i64: 16, 32>}]} {
    %c0_i32 = arith.constant 0 : i32
    %0 = arith.cmpi eq, %arg1, %c0_i32 : i32
    %1 = arith.extui %0 : i1 to i32
    %c0_i32_0 = arith.constant 0 : i32
    %2 = arith.cmpi ne, %1, %c0_i32_0 : i32
    scf.if %2 {
      %cst_19 = arith.constant 0.000000e+00 : f32
      %31 = vector.broadcast %cst_19 : f32 to vector<16x32xf32>
      %c0_20 = arith.constant 0 : index
      %c0_21 = arith.constant 0 : index
      %32 = vector.load %arg10[%c0_20, %c0_21] : memref<16x32xf32, #tpu.memory_space<vmem>>, vector<16x32xf32>
      tpu.vector_store %arg10[%c0_20, %c0_21], %31 {strides = array<i32>} : memref<16x32xf32, #tpu.memory_space<vmem>>, vector<16x32xf32>,
    } else {
    }
    %c0 = arith.constant 0 : index
    %c0_1 = arith.constant 0 : index
    %3 = vector.load %arg2[%c0, %c0_1] : memref<16x32xbf16, #tpu.memory_space<vmem>>, vector<16x32xbf16>
    %c0_2 = arith.constant 0 : index
    %c0_3 = arith.constant 0 : index
    %4 = vector.load %arg3[%c0_2, %c0_3] : memref<32x64xbf16, #tpu.memory_space<vmem>>, vector<32x64xbf16>
    %cst = arith.constant dense<0.000000e+00> : vector<16x64xf32>
    %5 = tpu.matmul %3, %4, %cst {dimension_numbers = #tpu.dot_dimension_numbers<[1], [0], [0], [1], [0, 0, 1, 1], [], []>} : vector<16x32xbf16>, vector<32x64xbf16>, vector<16x64xf32> -> vector<16x64xf32>
    %c0_4 = arith.constant 0 : index
    %c0_5 = arith.constant 0 : index
    %6 = vector.load %arg4[%c0_4, %c0_5] : memref<1x64xf32, #tpu.memory_space<vmem>>, vector<1x64xf32>
    %7 = vector.broadcast %6 : vector<1x64xf32> to vector<16x64xf32>
    %8 = arith.addf %5, %7 : vector<16x64xf32>
    %9 = arith.mulf %8, %8 : vector<16x64xf32>
    %10 = arith.mulf %8, %9 : vector<16x64xf32>
    %cst_6 = arith.constant 4.471500e-02 : f32
    %11 = vector.broadcast %cst_6 : f32 to vector<16x64xf32>
    %12 = arith.mulf %11, %10 : vector<16x64xf32>
    %13 = arith.addf %8, %12 : vector<16x64xf32>
    %cst_7 = arith.constant 0.797884583 : f32
    %14 = vector.broadcast %cst_7 : f32 to vector<16x64xf32>
    %15 = arith.mulf %14, %13 : vector<16x64xf32>
    %16 = math.tanh %15 : vector<16x64xf32>
    %cst_8 = arith.constant 1.000000e+00 : f32
    %17 = vector.broadcast %cst_8 : f32 to vector<16x64xf32>
    %18 = arith.addf %17, %16 : vector<16x64xf32>
    %cst_9 = arith.constant 5.000000e-01 : f32
    %19 = vector.broadcast %cst_9 : f32 to vector<16x64xf32>
    %20 = arith.mulf %19, %18 : vector<16x64xf32>
    %21 = arith.mulf %8, %20 : vector<16x64xf32>
    %c0_10 = arith.constant 0 : index
    %c0_11 = arith.constant 0 : index
    %22 = vector.load %arg10[%c0_10, %c0_11] : memref<16x32xf32, #tpu.memory_space<vmem>>, vector<16x32xf32>
    %23 = arith.truncf %21 : vector<16x64xf32> to vector<16x64xbf16>
    %c0_12 = arith.constant 0 : index
    %c0_13 = arith.constant 0 : index
    %24 = vector.load %arg5[%c0_12, %c0_13] : memref<64x32xbf16, #tpu.memory_space<vmem>>, vector<64x32xbf16>
    %cst_14 = arith.constant dense<0.000000e+00> : vector<16x32xf32>
    %25 = tpu.matmul %23, %24, %cst_14 {dimension_numbers = #tpu.dot_dimension_numbers<[1], [0], [0], [1], [0, 0, 1, 1], [], []>} : vector<16x64xbf16>, vector<64x32xbf16>, vector<16x32xf32> -> vector<16x32xf32>
    %26 = arith.addf %22, %25 : vector<16x32xf32>
    %c0_15 = arith.constant 0 : index
    %c0_16 = arith.constant 0 : index
    %27 = vector.load %arg10[%c0_15, %c0_16] : memref<16x32xf32, #tpu.memory_space<vmem>>, vector<16x32xf32>
    tpu.vector_store %arg10[%c0_15, %c0_16], %26 {strides = array<i32>} : memref<16x32xf32, #tpu.memory_space<vmem>>, vector<16x32xf32>,
    %c0_i32_17 = arith.constant 0 : i32
    %28 = arith.cmpi eq, %arg1, %c0_i32_17 : i32
    %29 = arith.extui %28 : i1 to i32
    %c0_i32_18 = arith.constant 0 : i32
    %30 = arith.cmpi ne, %29, %c0_i32_18 : i32
    scf.if %30 {
      %c0_19 = arith.constant 0 : index
      %c0_20 = arith.constant 0 : index
      %31 = vector.load %arg10[%c0_19, %c0_20] : memref<16x32xf32, #tpu.memory_space<vmem>>, vector<16x32xf32>
      %c0_21 = arith.constant 0 : index
      %c0_22 = arith.constant 0 : index
      %32 = vector.load %arg6[%c0_21, %c0_22] : memref<1x32xf32, #tpu.memory_space<vmem>>, vector<1x32xf32>
      %33 = vector.broadcast %32 : vector<1x32xf32> to vector<16x32xf32>
      %34 = arith.addf %31, %33 : vector<16x32xf32>
      %c0_23 = arith.constant 0 : index
      %c0_24 = arith.constant 0 : index
      %35 = vector.load %arg2[%c0_23, %c0_24] : memref<16x32xbf16, #tpu.memory_space<vmem>>, vector<16x32xbf16>
      %36 = arith.extf %35 : vector<16x32xbf16> to vector<16x32xf32>
      %37 = arith.addf %34, %36 : vector<16x32xf32>
      %c0_25 = arith.constant 0 : index
      %c0_26 = arith.constant 0 : index
      %38 = vector.load %arg7[%c0_25, %c0_26] : memref<1x32xf32, #tpu.memory_space<vmem>>, vector<1x32xf32>
      %c0_27 = arith.constant 0 : index
      %c0_28 = arith.constant 0 : index
      %39 = vector.load %arg8[%c0_27, %c0_28] : memref<1x32xf32, #tpu.memory_space<vmem>>, vector<1x32xf32>
      %cst_29 = arith.constant dense<0.000000e+00> : vector<16xf32>
      %40 = vector.multi_reduction <add>, %37, %cst_29 [1] : vector<16x32xf32> to vector<16xf32>
      %41 = vector.shape_cast %40 : vector<16xf32> to vector<16x1xf32>
      %cst_30 = arith.constant 3.200000e+01 : f32
      %42 = vector.broadcast %cst_30 : f32 to vector<16x1xf32>
      %43 = arith.divf %41, %42 : vector<16x1xf32>
      %44 = vector.broadcast %43 : vector<16x1xf32> to vector<16x32xf32>
      %45 = arith.subf %37, %44 : vector<16x32xf32>
      %46 = arith.mulf %45, %45 : vector<16x32xf32>
      %cst_31 = arith.constant dense<0.000000e+00> : vector<16xf32>
      %47 = vector.multi_reduction <add>, %46, %cst_31 [1] : vector<16x32xf32> to vector<16xf32>
      %48 = vector.shape_cast %47 : vector<16xf32> to vector<16x1xf32>
      %cst_32 = arith.constant 3.200000e+01 : f32
      %49 = vector.broadcast %cst_32 : f32 to vector<16x1xf32>
      %50 = arith.divf %48, %49 : vector<16x1xf32>
      %51 = vector.broadcast %43 : vector<16x1xf32> to vector<16x32xf32>
      %52 = arith.subf %37, %51 : vector<16x32xf32>
      %cst_33 = arith.constant 9.99999996E-13 : f32
      %53 = vector.broadcast %cst_33 : f32 to vector<16x1xf32>
      %54 = arith.addf %50, %53 : vector<16x1xf32>
      %55 = math.rsqrt %54 : vector<16x1xf32>
      %56 = vector.broadcast %55 : vector<16x1xf32> to vector<16x32xf32>
      %57 = arith.mulf %52, %56 : vector<16x32xf32>
      %58 = vector.broadcast %38 : vector<1x32xf32> to vector<16x32xf32>
      %59 = arith.mulf %57, %58 : vector<16x32xf32>
      %60 = vector.broadcast %39 : vector<1x32xf32> to vector<16x32xf32>
      %61 = arith.addf %59, %60 : vector<16x32xf32>
      %62 = arith.truncf %61 : vector<16x32xf32> to vector<16x32xbf16>
      %c0_34 = arith.constant 0 : index
      %c0_35 = arith.constant 0 : index
      %63 = vector.load %arg9[%c0_34, %c0_35] : memref<16x32xbf16, #tpu.memory_space<vmem>>, vector<16x32xbf16>
      tpu.vector_store %arg9[%c0_34, %c0_35], %62 {strides = array<i32>} : memref<16x32xbf16, #tpu.memory_space<vmem>>, vector<16x32xbf16>,
    } else {
    }
    return
  }
  func.func @transform_0(%arg0: i32, %arg1: i32) -> (i32, i32) {
    %c0_i32 = arith.constant 0 : i32
    %c0_i32_0 = arith.constant 0 : i32
    return %arg0, %c0_i32 : i32, i32
  }
  func.func @transform_1(%arg0: i32, %arg1: i32) -> (i32, i32) {
    %c0_i32 = arith.constant 0 : i32
    %c0_i32_0 = arith.constant 0 : i32
    return %c0_i32, %arg1 : i32, i32
  }
  func.func @transform_2(%arg0: i32, %arg1: i32) -> (i32, i32) {
    %c0_i32 = arith.constant 0 : i32
    %c0_i32_0 = arith.constant 0 : i32
    return %c0_i32, %arg1 : i32, i32
  }
  func.func @transform_3(%arg0: i32, %arg1: i32) -> (i32, i32) {
    %c0_i32 = arith.constant 0 : i32
    %c0_i32_0 = arith.constant 0 : i32
    return %arg1, %c0_i32 : i32, i32
  }
  func.func @transform_4(%arg0: i32, %arg1: i32) -> (i32, i32) {
    %c0_i32 = arith.constant 0 : i32
    %c0_i32_0 = arith.constant 0 : i32
    %c0_i32_1 = arith.constant 0 : i32
    return %c0_i32, %c0_i32_0 : i32, i32
  }
  func.func @transform_5(%arg0: i32, %arg1: i32) -> (i32, i32) {
    %c0_i32 = arith.constant 0 : i32
    %c0_i32_0 = arith.constant 0 : i32
    %c0_i32_1 = arith.constant 0 : i32
    return %c0_i32, %c0_i32_0 : i32, i32
  }
  func.func @transform_6(%arg0: i32, %arg1: i32) -> (i32, i32) {
    %c0_i32 = arith.constant 0 : i32
    %c0_i32_0 = arith.constant 0 : i32
    %c0_i32_1 = arith.constant 0 : i32
    return %c0_i32, %c0_i32_0 : i32, i32
  }
  func.func @transform_7(%arg0: i32, %arg1: i32) -> (i32, i32) {
    %c0_i32 = arith.constant 0 : i32
    %c0_i32_0 = arith.constant 0 : i32
    return %arg0, %c0_i32 : i32, i32
  }
}

</mosaic_0001>

<llo_original>
// kernel: godcaster_layer_forward.5
$region0: #{godcaster_layer_forward.5}
  #allocation0 [shape = 'u32[]', space=smem, size = 0x4, offset = 0x4, fixed_abs, tag = 'smem constant byte address 0x4 - core index']
  #allocation1 [shape = 'u32[144,128]{1,0:T(1,128)}', space=vmem, size = 0x12000, scoped, tag = 'internal scratch']
  %s0 = inlined_call_operand.vmem [shape: bf16[16,32], index: 0, kind: input, shape index: {}]
  %s1 = inlined_call_operand.vmem [shape: bf16[32,32], index: 1, kind: input, shape index: {}]
  %s2 = inlined_call_operand.vmem [shape: f32[1,32], index: 2, kind: input, shape index: {}]
  %s3 = inlined_call_operand.vmem [shape: bf16[16,32], index: 3, kind: output, shape index: {}]
  %s4 = sld [smem:[#allocation0]]
  $region22: #{godcaster_layer_forward.5} parent=0
    _
  %s6 = ssub.s32 1, %s4
  %s7 = scalar_select 0, %s6, %s4
  // Predicated region
  $region2: #{godcaster_layer_forward.5} parent=0 // pred_check
    _
  $region3: #{godcaster_layer_forward.5} parent=0 // pred_check_branch
    %9 = sbr.rel (0) target = $region5
  $region4: #{godcaster_layer_forward.5} parent=0 // pred_region
    _
  $region5: #{godcaster_layer_forward.5} parent=0 // pred_fallthru
    _
  // Predicated region
  $region6: #{godcaster_layer_forward.5} parent=0 // pred_check
    _
  $region7: #{godcaster_layer_forward.5} parent=0 // pred_check_branch
    %11 = sbr.rel (0) target = $region9
  $region8: #{godcaster_layer_forward.5} parent=0 // pred_region
    _
  $region9: #{godcaster_layer_forward.5} parent=0 // pred_fallthru
    _
  // Predicated region
  $region10: #{godcaster_layer_forward.5} parent=0 // pred_check
    _
  $region11: #{godcaster_layer_forward.5} parent=0 // pred_check_branch
    %13 = sbr.rel (0) target = $region13
  $region12: #{godcaster_layer_forward.5} parent=0 // pred_region
    _
  $region13: #{godcaster_layer_forward.5} parent=0 // pred_fallthru
    _
  %v15 = vld [vmem:[%s0] sm:$0xf]
  %v16 = vld [vmem:[%s0 + $0x4] sm:$0xf]
  %v17 = vld [vmem:[%s1] sm:$0xf]
  %v18 = vld [vmem:[%s1 + $0x4] sm:$0xf]
  %v19 = vld [vmem:[%s1 + $0x8] sm:$0xf]
  %v20 = vld [vmem:[%s1 + $0xc] sm:$0xf]
  %v21 = vld [vmem:[%s2] sm:$0x1]
  %v23 = vlaneseq
  %v24 = vshrl.u32 %v23, 7
  %v25 = vsub.s32 0, %v24
  %v26 = vrot.slane %v21, %v25
  %v30 = vunpack.c.l.b16 %v15
  %v31 = vunpack.c.l.b16 %v16
  %v32 = vpack.c.b16 %v31, %v30
  %v37 = vunpack.c.l.b16 %v17
  %v38 = vunpack.c.l.b16 %v18
  %v39 = vunpack.c.l.b16 %v19
  %v40 = vunpack.c.l.b16 %v20
  %v41 = vpack.c.b16 %v38, %v37
  %v42 = vpack.c.b16 %v40, %v39
  %vm45 = vcmask 261120
  %v47 = vsel %vm45, %v32, 0
  %49 = vmatprep.subr.bf16.mxu0 0
  %50 = vmatpush1.bf16.msra.mxu0 0
  %51 = vmatprep.subr.bf16.mxu0 0
  %52 = vmatpush1.bf16.msra.mxu0 0
  %53 = vmatprep.subr.bf16.mxu0 0
  %54 = vmatpush1.bf16.msra.mxu0 0
  %55 = vmatprep.subr.bf16.mxu0 0
  %56 = vmatpush1.bf16.msra.mxu0 0
  %57 = vmatprep.subr.bf16.mxu0 0
  %58 = vmatpush1.bf16.msra.mxu0 0
  %59 = vmatprep.subr.bf16.mxu0 0
  %60 = vmatpush1.bf16.msra.mxu0 0
  %61 = vmatprep.subr.bf16.mxu0 0
  %62 = vmatpush1.bf16.msra.mxu0 %v42
  %63 = vmatprep.subr.bf16.mxu0 0
  %64 = vmatpush1.bf16.msra.mxu0 %v41
  %65 = vmatprep.subr.bf16.mxu0 0
  %66 = vmatpush2.bf16.msra.mxu0 0
  %67 = vmatprep.subr.bf16.mxu0 0
  %68 = vmatpush2.bf16.msra.mxu0 0
  %69 = vmatprep.subr.bf16.mxu0 0
  %70 = vmatpush2.bf16.msra.mxu0 0
  %71 = vmatprep.subr.bf16.mxu0 0
  %72 = vmatpush2.bf16.msra.mxu0 0
  %73 = vmatprep.subr.bf16.mxu0 0
  %74 = vmatpush2.bf16.msra.mxu0 0
  %75 = vmatprep.subr.bf16.mxu0 0
  %76 = vmatpush2.bf16.msra.mxu0 0
  %77 = vmatprep.subr.bf16.mxu0 0
  %78 = vmatpush2.bf16.msra.mxu0 0
  %79 = vmatprep.subr.bf16.mxu0 0
  %80 = vmatpush2.bf16.msra.mxu0 0
  %81 = vmatprep.mubr.bf16.mxu0 0
  %82 = vmatmul.mubr.bf16.gmra.mxu0 %v47
  %v83 = vpop.f32.mrf.mxu0
  %v84 = vadd.f32 %v26, %v83
  %v85 = vpop.f32.mrf.mxu0
  %v86 = vpop.f32.mrf.mxu0
  %v87 = vadd.f32 %v26, %v86
  %v88 = vpop.f32.mrf.mxu0
  %89 = vdwg.mxu0
  %v90 = vpack.c.bf16 %v87, %v84
  %v92 = vunpack.c.l.b16 %v90
  %v93 = vunpack.c.h.b16 %v90
  %v94 = vpack.c.b16 %v92, %v92
  %v95 = vpack.c.b16 %v93, %v93
  %vm98 = vcmask 257024
  %99 = vst.msk [vmem:[%s3] sm:$0xf] %vm98, %v94
  %100 = vst.msk [vmem:[%s3 + $0x4] sm:$0xf] %vm98, %v95
  // Predicated region
  $region14: #{godcaster_layer_forward.5} parent=0 // pred_check
    _
  $region15: #{godcaster_layer_forward.5} parent=0 // pred_check_branch
    %102 = sbr.rel (0) target = $region17
  $region16: #{godcaster_layer_forward.5} parent=0 // pred_region
    _
  $region17: #{godcaster_layer_forward.5} parent=0 // pred_fallthru
    _
  // Predicated region
  $region18: #{godcaster_layer_forward.5} parent=0 // pred_check
    _
  $region19: #{godcaster_layer_forward.5} parent=0 // pred_check_branch
    %104 = sbr.rel (0) target = $region21
  $region20: #{godcaster_layer_forward.5} parent=0 // pred_region
    _
  $region21: #{godcaster_layer_forward.5} parent=0 // pred_fallthru
    _

// kernel: godcaster_layer_forward.6
$region0: #{godcaster_layer_forward.6}
  #allocation0 [shape = 'u32[]', space=smem, size = 0x4, offset = 0x4, fixed_abs, tag = 'smem constant byte address 0x4 - core index']
  #allocation1 [shape = 'u32[144,128]{1,0:T(1,128)}', space=vmem, size = 0x12000, scoped, tag = 'internal scratch']
  %s0 = inlined_call_operand.vmem [shape: bf16[48,32], index: 0, kind: input, shape index: {}]
  %s1 = inlined_call_operand.vmem [shape: bf16[32,64], index: 1, kind: input, shape index: {}]
  %s2 = inlined_call_operand.vmem [shape: f32[1,64], index: 2, kind: input, shape index: {}]
  %s3 = inlined_call_operand.vmem [shape: bf16[48,64], index: 3, kind: output, shape index: {}]
  %s4 = sld [smem:[#allocation0]]
  $region22: #{godcaster_layer_forward.6} parent=0
    _
  %s6 = ssub.s32 1, %s4
  %s7 = scalar_select 0, %s6, %s4
  // Predicated region
  $region2: #{godcaster_layer_forward.6} parent=0 // pred_check
    _
  $region3: #{godcaster_layer_forward.6} parent=0 // pred_check_branch
    %9 = sbr.rel (0) target = $region5
  $region4: #{godcaster_layer_forward.6} parent=0 // pred_region
    _
  $region5: #{godcaster_layer_forward.6} parent=0 // pred_fallthru
    _
  // Predicated region
  $region6: #{godcaster_layer_forward.6} parent=0 // pred_check
    _
  $region7: #{godcaster_layer_forward.6} parent=0 // pred_check_branch
    %11 = sbr.rel (0) target = $region9
  $region8: #{godcaster_layer_forward.6} parent=0 // pred_region
    _
  $region9: #{godcaster_layer_forward.6} parent=0 // pred_fallthru
    _
  // Predicated region
  $region10: #{godcaster_layer_forward.6} parent=0 // pred_check
    _
  $region11: #{godcaster_layer_forward.6} parent=0 // pred_check_branch
    %13 = sbr.rel (0) target = $region13
  $region12: #{godcaster_layer_forward.6} parent=0 // pred_region
    _
  $region13: #{godcaster_layer_forward.6} parent=0 // pred_fallthru
    _
  %v15 = vld [vmem:[%s0] sm:$0xf]
  %v16 = vld [vmem:[%s0 + $0x4] sm:$0xf]
  %v17 = vld [vmem:[%s0 + $0x8] sm:$0xf]
  %v18 = vld [vmem:[%s0 + $0xc] sm:$0xf]
  %v19 = vld [vmem:[%s0 + $0x10] sm:$0xf]
  %v20 = vld [vmem:[%s0 + $0x14] sm:$0xf]
  %v21 = vld [vmem:[%s1] sm:$0xf]
  %v22 = vld [vmem:[%s1 + $0x4] sm:$0xf]
  %v23 = vld [vmem:[%s1 + $0x8] sm:$0xf]
  %v24 = vld [vmem:[%s1 + $0xc] sm:$0xf]
  %v25 = vld [vmem:[%s2] sm:$0x1]
  %v27 = vlaneseq
  %v28 = vshrl.u32 %v27, 7
  %v29 = vsub.s32 0, %v28
  %v30 = vrot.slane %v25, %v29
  %v38 = vunpack.c.l.b16 %v15
  %v39 = vunpack.c.l.b16 %v16
  %v40 = vunpack.c.l.b16 %v17
  %v41 = vunpack.c.l.b16 %v18
  %v42 = vunpack.c.l.b16 %v19
  %v43 = vunpack.c.l.b16 %v20
  %v44 = vpack.c.b16 %v39, %v38
  %v45 = vpack.c.b16 %v41, %v40
  %v46 = vpack.c.b16 %v43, %v42
  %v51 = vunpack.c.l.b16 %v21
  %v52 = vunpack.c.l.b16 %v22
  %v53 = vunpack.c.l.b16 %v23
  %v54 = vunpack.c.l.b16 %v24
  %v55 = vpack.c.b16 %v52, %v51
  %v56 = vpack.c.b16 %v54, %v53
  %vm59 = vcmask 261120
  %v61 = vsel %vm59, %v44, 0
  %v64 = vsel %vm59, %v45, 0
  %v67 = vsel %vm59, %v46, 0
  %69 = vmatprep.subr.bf16.mxu0 0
  %70 = vmatpush1.bf16.msra.mxu0 0
  %71 = vmatprep.subr.bf16.mxu0 0
  %72 = vmatpush1.bf16.msra.mxu0 0
  %73 = vmatprep.subr.bf16.mxu0 0
  %74 = vmatpush1.bf16.msra.mxu0 0
  %75 = vmatprep.subr.bf16.mxu0 0
  %76 = vmatpush1.bf16.msra.mxu0 0
  %77 = vmatprep.subr.bf16.mxu0 0
  %78 = vmatpush1.bf16.msra.mxu0 0
  %79 = vmatprep.subr.bf16.mxu0 0
  %80 = vmatpush1.bf16.msra.mxu0 0
  %81 = vmatprep.subr.bf16.mxu0 0
  %82 = vmatpush1.bf16.msra.mxu0 %v56
  %83 = vmatprep.subr.bf16.mxu0 0
  %84 = vmatpush1.bf16.msra.mxu0 %v55
  %85 = vmatprep.subr.bf16.mxu0 0
  %86 = vmatpush2.bf16.msra.mxu0 0
  %87 = vmatprep.subr.bf16.mxu0 0
  %88 = vmatpush2.bf16.msra.mxu0 0
  %89 = vmatprep.subr.bf16.mxu0 0
  %90 = vmatpush2.bf16.msra.mxu0 0
  %91 = vmatprep.subr.bf16.mxu0 0
  %92 = vmatpush2.bf16.msra.mxu0 0
  %93 = vmatprep.subr.bf16.mxu0 0
  %94 = vmatpush2.bf16.msra.mxu0 0
  %95 = vmatprep.subr.bf16.mxu0 0
  %96 = vmatpush2.bf16.msra.mxu0 0
  %97 = vmatprep.subr.bf16.mxu0 0
  %98 = vmatpush2.bf16.msra.mxu0 0
  %99 = vmatprep.subr.bf16.mxu0 0
  %100 = vmatpush2.bf16.msra.mxu0 0
  %101 = vmatprep.mubr.bf16.mxu0 0
  %102 = vmatmul.mubr.bf16.gmra.mxu0 %v61
  %v103 = vpop.f32.mrf.mxu0
  %v104 = vadd.f32 %v30, %v103
  %v105 = vpop.f32.mrf.mxu0
  %v106 = vpop.f32.mrf.mxu0
  %v107 = vadd.f32 %v30, %v106
  %v108 = vpop.f32.mrf.mxu0
  %109 = vmatprep.mubr.bf16.mxu0 0
  %110 = vmatmul.mubr.bf16.gmra.mxu0 %v64
  %v111 = vpop.f32.mrf.mxu0
  %v112 = vadd.f32 %v30, %v111
  %v113 = vpop.f32.mrf.mxu0
  %v114 = vpop.f32.mrf.mxu0
  %v115 = vadd.f32 %v30, %v114
  %v116 = vpop.f32.mrf.mxu0
  %117 = vmatprep.mubr.bf16.mxu0 0
  %118 = vmatmul.mubr.bf16.gmra.mxu0 %v67
  %v119 = vpop.f32.mrf.mxu0
  %v120 = vadd.f32 %v30, %v119
  %v121 = vpop.f32.mrf.mxu0
  %v122 = vpop.f32.mrf.mxu0
  %v123 = vadd.f32 %v30, %v122
  %v124 = vpop.f32.mrf.mxu0
  %125 = vdwg.mxu0
  %v126 = vpack.c.bf16 %v107, %v104
  %v127 = vpack.c.bf16 %v115, %v112
  %v128 = vpack.c.bf16 %v123, %v120
  %v132 = vunpack.c.l.b16 %v126
  %v133 = vunpack.c.h.b16 %v126
  %v134 = vunpack.c.l.b16 %v127
  %v135 = vunpack.c.h.b16 %v127
  %v136 = vunpack.c.l.b16 %v128
  %v137 = vunpack.c.h.b16 %v128
  %v138 = vpack.c.b16 %v132, %v132
  %v139 = vpack.c.b16 %v133, %v133
  %v140 = vpack.c.b16 %v134, %v134
  %v141 = vpack.c.b16 %v135, %v135
  %v142 = vpack.c.b16 %v136, %v136
  %v143 = vpack.c.b16 %v137, %v137
  %vm150 = vcmask 519168
  %151 = vst.msk [vmem:[%s3] sm:$0xf] %vm150, %v138
  %152 = vst.msk [vmem:[%s3 + $0x4] sm:$0xf] %vm150, %v139
  %153 = vst.msk [vmem:[%s3 + $0x8] sm:$0xf] %vm150, %v140
  %154 = vst.msk [vmem:[%s3 + $0xc] sm:$0xf] %vm150, %v141
  %155 = vst.msk [vmem:[%s3 + $0x10] sm:$0xf] %vm150, %v142
  %156 = vst.msk [vmem:[%s3 + $0x14] sm:$0xf] %vm150, %v143
  // Predicated region
  $region14: #{godcaster_layer_forward.6} parent=0 // pred_check
    _
  $region15: #{godcaster_layer_forward.6} parent=0 // pred_check_branch
    %158 = sbr.rel (0) target = $region17
  $region16: #{godcaster_layer_forward.6} parent=0 // pred_region
    _
  $region17: #{godcaster_layer_forward.6} parent=0 // pred_fallthru
    _
  // Predicated region
  $region18: #{godcaster_layer_forward.6} parent=0 // pred_check
    _
  $region19: #{godcaster_layer_forward.6} parent=0 // pred_check_branch
    %160 = sbr.rel (0) target = $region21
  $region20: #{godcaster_layer_forward.6} parent=0 // pred_region
    _
  $region21: #{godcaster_layer_forward.6} parent=0 // pred_fallthru
    _

// kernel: godcaster_layer_forward.7
$region0: #{godcaster_layer_forward.7}
  #allocation0 [shape = 'u32[]', space=smem, size = 0x4, offset = 0x4, fixed_abs, tag = 'smem constant byte address 0x4 - core index']
  #allocation1 [shape = 'u32[144,128]{1,0:T(1,128)}', space=vmem, size = 0x12000, scoped, tag = 'internal scratch']
  #allocation2 [shape = 'f32[8,1]{1,0:T(8,128)}', space=vmem, size = 0x1000, scoped, tag = 'scratch operand']
  #allocation3 [shape = 'f32[8,1]{1,0:T(8,128)}', space=vmem, size = 0x1000, scoped, tag = 'scratch operand']
  #allocation4 [shape = 'f32[8,8]{1,0:T(8,128)}', space=vmem, size = 0x1000, scoped, tag = 'scratch operand']
  %s0 = inlined_call_operand.vmem [shape: bf16[2,4,8,8], index: 0, kind: input, shape index: {}]
  %s1 = inlined_call_operand.vmem [shape: bf16[2,8,24,8], index: 1, kind: input, shape index: {}, may-alias: {1,2}]
  %s2 = inlined_call_operand.vmem [shape: bf16[2,8,24,8], index: 2, kind: input, shape index: {}, may-alias: {1,2}]
  %s3 = inlined_call_operand.vmem [shape: bf16[2,4,8,8], index: 3, kind: output, shape index: {}]
  %s4 = sld [smem:[#allocation0]]
  $region53: #{godcaster_layer_forward.7} parent=0
    _
  %s6 = ssub.s32 1, %s4
  %s7 = scalar_select 0, %s6, %s4
  loop: start=0, step=1, limit=10
  $region2: #{godcaster_layer_forward.7} parent=0 // loop_pre_header
    _
  $region3: #{godcaster_layer_forward.7} parent=0 // loop_header
    %s9 = sphi 0, %s13
    %p10 = scmp.ge.s32.totalorder %s9, 10
    %s16 = sphi 0, %s42
    %s17 = sphi 0, %s38
    %s18 = sphi 0, %s34
    %s19 = sphi 0, %s30
    %s20 = sphi 0, %s16
    %s21 = sphi 0, %s17
    %s22 = sphi 0, %s18
    %s23 = sphi 0, %s19
    %s24 = sphi 0, %s20
    %s25 = sphi 0, %s21
    %s26 = sphi 0, %s22
    %s27 = sphi 0, %s23
    %s49 = sphi 0, %s51
    %s52 = sphi 0, %s49
    %s53 = sphi 0, %s52
    %s69 = sphi 0, %s53
    %s79 = sphi 0, %s81
    %s82 = sphi 0, %s79
    %s83 = sphi 0, %s82
    %s99 = sphi 0, %s83
    %s111 = sphi 0, %s113
    %s114 = sphi 0, %s111
    %s115 = sphi 0, %s114
    %s131 = sphi 0, %s115
    %s141 = sphi 0, %s143
    %s144 = sphi 0, %s141
    %s145 = sphi 0, %s144
    %s161 = sphi 0, %s145
  $region4: #{godcaster_layer_forward.7} parent=0 // loop_header_branch
    %12 = sbr.rel (%p10) target = $region8
  $region5: #{godcaster_layer_forward.7} parent=0 // loop_body
    %s14 = ssub.s32 %s9, 1
    %s15 = ssub.s32 %s9, 2
    %s28 = sadd.s32 1, %s19
    %p29 = scmp.ge.s32.totalorder %s28, 1
    %s30 = scalar_select %p29, 0, %s28
    %s31 = sadd.s32 1, %s18
    %s32 = scalar_select %p29, %s31, %s18
    %p33 = scmp.ge.s32.totalorder %s32, 1
    %s34 = scalar_select %p33, 0, %s32
    %s35 = sadd.s32 1, %s17
    %s36 = scalar_select %p33, %s35, %s17
    %p37 = scmp.ge.s32.totalorder %s36, 4
    %s38 = scalar_select %p37, 0, %s36
    %s39 = sadd.s32 1, %s16
    %s40 = scalar_select %p37, %s39, %s16
    %p41 = scmp.ge.s32.totalorder %s40, 2
    %s42 = scalar_select %p41, 0, %s40
    %s43 = ssub.s32 %s16, %s42
    %s44 = ssub.s32 %s17, %s38
    %s45 = sor.u32 %s43, %s44
    %s46 = ssub.s32 %s18, %s34
    %s47 = sor.u32 %s45, %s46
    %p48 = scmp.eq.s32.totalorder %s47, 0
    %s50 = sadd.s32 %s49, 1
    %s51 = scalar_select %p48, %s49, %s50
    %p54 = pneg %p48
    %p55 = scmp.eq.s32.totalorder %s9, 7
    %p56 = por %p54, %p55
    %p57 = scmp.ne.s32.totalorder %s49, %s52
    %p58 = scmp.eq.s32.totalorder %s9, 0
    %p59 = por %p57, %p58
    %p60 = scmp.ne.s32.totalorder %s49, %s52
    %p61 = scmp.eq.s32.totalorder %s14, 7
    %p62 = por %p60, %p61
    %p63 = scmp.ne.s32.totalorder %s52, %s53
    %p64 = scmp.eq.s32.totalorder %s14, 0
    %p65 = por %p63, %p64
    %p66 = scmp.ne.s32.totalorder %s52, %s53
    %p67 = scmp.eq.s32.totalorder %s15, 7
    %p68 = por %p66, %p67
    %p70 = scmp.ne.s32.totalorder %s53, %s69
    %p71 = scmp.eq.s32.totalorder %s15, 0
    %p72 = por %p70, %p71
    %s73 = ssub.s32 %s16, %s42
    %s74 = ssub.s32 %s17, %s38
    %s75 = sor.u32 %s73, %s74
    %s76 = ssub.s32 %s19, %s30
    %s77 = sor.u32 %s75, %s76
    %p78 = scmp.eq.s32.totalorder %s77, 0
    %s80 = sadd.s32 %s79, 1
    %s81 = scalar_select %p78, %s79, %s80
    %p84 = pneg %p78
    %p85 = scmp.eq.s32.totalorder %s9, 7
    %p86 = por %p84, %p85
    %p87 = scmp.ne.s32.totalorder %s79, %s82
    %p88 = scmp.eq.s32.totalorder %s9, 0
    %p89 = por %p87, %p88
    %p90 = scmp.ne.s32.totalorder %s79, %s82
    %p91 = scmp.eq.s32.totalorder %s14, 7
    %p92 = por %p90, %p91
    %p93 = scmp.ne.s32.totalorder %s82, %s83
    %p94 = scmp.eq.s32.totalorder %s14, 0
    %p95 = por %p93, %p94
    %p96 = scmp.ne.s32.totalorder %s82, %s83
    %p97 = scmp.eq.s32.totalorder %s15, 7
    %p98 = por %p96, %p97
    %p100 = scmp.ne.s32.totalorder %s83, %s99
    %p101 = scmp.eq.s32.totalorder %s15, 0
    %p102 = por %p100, %p101
    %s103 = sadd.s32 %s17, 4
    %s104 = sadd.s32 %s38, 4
    %s105 = ssub.s32 %s16, %s42
    %s106 = ssub.s32 %s103, %s104
    %s107 = sor.u32 %s105, %s106
    %s108 = ssub.s32 %s19, %s30
    %s109 = sor.u32 %s107, %s108
    %p110 = scmp.eq.s32.totalorder %s109, 0
    %s112 = sadd.s32 %s111, 1
    %s113 = scalar_select %p110, %s111, %s112
    %p116 = pneg %p110
    %p117 = scmp.eq.s32.totalorder %s9, 7
    %p118 = por %p116, %p117
    %p119 = scmp.ne.s32.totalorder %s111, %s114
    %p120 = scmp.eq.s32.totalorder %s9, 0
    %p121 = por %p119, %p120
    %p122 = scmp.ne.s32.totalorder %s111, %s114
    %p123 = scmp.eq.s32.totalorder %s14, 7
    %p124 = por %p122, %p123
    %p125 = scmp.ne.s32.totalorder %s114, %s115
    %p126 = scmp.eq.s32.totalorder %s14, 0
    %p127 = por %p125, %p126
    %p128 = scmp.ne.s32.totalorder %s114, %s115
    %p129 = scmp.eq.s32.totalorder %s15, 7
    %p130 = por %p128, %p129
    %p132 = scmp.ne.s32.totalorder %s115, %s131
    %p133 = scmp.eq.s32.totalorder %s15, 0
    %p134 = por %p132, %p133
    %s135 = ssub.s32 %s16, %s42
    %s136 = ssub.s32 %s17, %s38
    %s137 = sor.u32 %s135, %s136
    %s138 = ssub.s32 %s18, %s34
    %s139 = sor.u32 %s137, %s138
    %p140 = scmp.eq.s32.totalorder %s139, 0
    %s142 = sadd.s32 %s141, 1
    %s143 = scalar_select %p140, %s141, %s142
    %p146 = pneg %p140
    %p147 = scmp.eq.s32.totalorder %s9, 7
    %p148 = por %p146, %p147
    %p149 = scmp.ne.s32.totalorder %s141, %s144
    %p150 = scmp.eq.s32.totalorder %s9, 0
    %p151 = por %p149, %p150
    %p152 = scmp.ne.s32.totalorder %s141, %s144
    %p153 = scmp.eq.s32.totalorder %s14, 7
    %p154 = por %p152, %p153
    %p155 = scmp.ne.s32.totalorder %s144, %s145
    %p156 = scmp.eq.s32.totalorder %s14, 0
    %p157 = por %p155, %p156
    %p158 = scmp.ne.s32.totalorder %s144, %s145
    %p159 = scmp.eq.s32.totalorder %s15, 7
    %p160 = por %p158, %p159
    %p162 = scmp.ne.s32.totalorder %s145, %s161
    %p163 = scmp.eq.s32.totalorder %s15, 0
    %p164 = por %p162, %p163
    %p165 = scmp.le.s32.totalorder 1, %s9
    %p166 = scmp.lt.s32.totalorder %s9, 9
    %p167 = pnand %p165, %p166
    %p168 = pneg %p167
    // Predicated region
    $region9: #{godcaster_layer_forward.7} parent=5 // pred_check
      _
    $region10: #{godcaster_layer_forward.7} parent=5 // pred_check_branch
      %170 = sbr.rel (%p167) target = $region12
    $region11: #{godcaster_layer_forward.7} parent=5 // pred_region
      %s171 = ssub.s32 %s9, 1
    $region12: #{godcaster_layer_forward.7} parent=5 // pred_fallthru
      _
    %p172 = scmp.lt.s32.totalorder %s9, 8
    // Predicated region
    $region13: #{godcaster_layer_forward.7} parent=5 // pred_check
      %p173 = pneg %p172
    $region14: #{godcaster_layer_forward.7} parent=5 // pred_check_branch
      %175 = sbr.rel (%p173) target = $region16
    $region15: #{godcaster_layer_forward.7} parent=5 // pred_region
      // Predicated region
      $region17: #{godcaster_layer_forward.7} parent=15 // pred_check
        %p176 = pneg %p59
      $region18: #{godcaster_layer_forward.7} parent=15 // pred_check_branch
        %178 = sbr.rel (%p176) target = $region20
      $region19: #{godcaster_layer_forward.7} parent=15 // pred_region
        %p179 = scmp.lt.s32.totalorder %s16, 1
        %s180 = scalar_select %p179, %s16, 1
        %p181 = scmp.lt.s32.totalorder %s17, 3
        %s182 = scalar_select %p181, %s17, 3
        %p183 = scmp.lt.s32.totalorder %s18, 0
        %s184 = scalar_select %p183, %s18, 0
        %s185 = sadd.s32 %s184, %s182
        %s186 = smul.addr %s180, 4
        %s187 = sadd.s32 %s185, %s186
        %s188 = smul.addr %s187, 4
        %s189 = scalar_lea.vmem %s0, %s188
      $region20: #{godcaster_layer_forward.7} parent=15 // pred_fallthru
        _
      // Predicated region
      $region21: #{godcaster_layer_forward.7} parent=15 // pred_check
        %p190 = pneg %p89
      $region22: #{godcaster_layer_forward.7} parent=15 // pred_check_branch
        %192 = sbr.rel (%p190) target = $region24
      $region23: #{godcaster_layer_forward.7} parent=15 // pred_region
        %s193 = smul.u32 3, %s19
        %p194 = scmp.lt.s32.totalorder %s16, 1
        %s195 = scalar_select %p194, %s16, 1
        %p196 = scmp.lt.s32.totalorder %s17, 7
        %s197 = scalar_select %p196, %s17, 7
        %p198 = scmp.lt.s32.totalorder %s193, 2
        %s199 = scalar_select %p198, %s193, 2
        %s200 = smul.addr %s197, 3
        %s201 = sadd.s32 %s199, %s200
        %s202 = smul.addr %s195, 24
        %s203 = sadd.s32 %s201, %s202
        %s204 = smul.addr %s203, 4
        %s205 = scalar_lea.vmem %s1, %s204
        %s206 = smul.u32 3, %s19
      $region24: #{godcaster_layer_forward.7} parent=15 // pred_fallthru
        _
      // Predicated region
      $region25: #{godcaster_layer_forward.7} parent=15 // pred_check
        %p207 = pneg %p121
      $region26: #{godcaster_layer_forward.7} parent=15 // pred_check_branch
        %209 = sbr.rel (%p207) target = $region28
      $region27: #{godcaster_layer_forward.7} parent=15 // pred_region
        %s210 = sadd.s32 %s17, 4
        %s211 = smul.u32 3, %s19
        %p212 = scmp.lt.s32.totalorder %s16, 1
        %s213 = scalar_select %p212, %s16, 1
        %p214 = scmp.lt.s32.totalorder %s210, 7
        %s215 = scalar_select %p214, %s210, 7
        %p216 = scmp.lt.s32.totalorder %s211, 2
        %s217 = scalar_select %p216, %s211, 2
        %s218 = smul.addr %s215, 3
        %s219 = sadd.s32 %s217, %s218
        %s220 = smul.addr %s213, 24
        %s221 = sadd.s32 %s219, %s220
        %s222 = smul.addr %s221, 4
        %s223 = scalar_lea.vmem %s2, %s222
        %s224 = sadd.s32 %s17, 4
        %s225 = smul.u32 3, %s19
      $region28: #{godcaster_layer_forward.7} parent=15 // pred_fallthru
        _
    $region16: #{godcaster_layer_forward.7} parent=5 // pred_fallthru
      _
    %p226 = scmp.le.s32.totalorder 1, %s9
    %p227 = scmp.lt.s32.totalorder %s9, 9
    %p228 = pnand %p226, %p227
    %p229 = pneg %p228
    // Predicated region
    $region29: #{godcaster_layer_forward.7} parent=5 // pred_check
      _
    $region30: #{godcaster_layer_forward.7} parent=5 // pred_check_branch
      %231 = sbr.rel (%p228) target = $region32
    $region31: #{godcaster_layer_forward.7} parent=5 // pred_region
      %s232 = ssub.s32 %s9, 1
      %p233 = scmp.lt.s32.totalorder %s20, 1
      %s234 = scalar_select %p233, %s20, 1
      %p235 = scmp.lt.s32.totalorder %s21, 3
      %s236 = scalar_select %p235, %s21, 3
      %p237 = scmp.lt.s32.totalorder %s22, 0
      %s238 = scalar_select %p237, %s22, 0
      %s239 = sadd.s32 %s238, %s236
      %s240 = smul.addr %s234, 4
      %s241 = sadd.s32 %s239, %s240
      %s242 = smul.addr %s241, 4
      %s243 = scalar_lea.vmem %s0, %s242
      %p244 = pneg %p65
      %p245 = pneg %p62
      %s246 = smul.u32 3, %s23
      %p247 = scmp.lt.s32.totalorder %s20, 1
      %s248 = scalar_select %p247, %s20, 1
      %p249 = scmp.lt.s32.totalorder %s21, 7
      %s250 = scalar_select %p249, %s21, 7
      %p251 = scmp.lt.s32.totalorder %s246, 2
      %s252 = scalar_select %p251, %s246, 2
      %s253 = smul.addr %s250, 3
      %s254 = sadd.s32 %s252, %s253
      %s255 = smul.addr %s248, 24
      %s256 = sadd.s32 %s254, %s255
      %s257 = smul.addr %s256, 4
      %s258 = scalar_lea.vmem %s1, %s257
      %p259 = pneg %p95
      %p260 = pneg %p92
      %s261 = sadd.s32 %s21, 4
      %s262 = smul.u32 3, %s23
      %p263 = scmp.lt.s32.totalorder %s20, 1
      %s264 = scalar_select %p263, %s20, 1
      %p265 = scmp.lt.s32.totalorder %s261, 7
      %s266 = scalar_select %p265, %s261, 7
      %p267 = scmp.lt.s32.totalorder %s262, 2
      %s268 = scalar_select %p267, %s262, 2
      %s269 = smul.addr %s266, 3
      %s270 = sadd.s32 %s268, %s269
      %s271 = smul.addr %s264, 24
      %s272 = sadd.s32 %s270, %s271
      %s273 = smul.addr %s272, 4
      %s274 = scalar_lea.vmem %s2, %s273
      %p275 = pneg %p127
      %p276 = pneg %p124
      %p277 = pneg %p157
      %p278 = pneg %p154
      %p279 = scmp.lt.s32.totalorder %s20, 1
      %s280 = scalar_select %p279, %s20, 1
      %p281 = scmp.lt.s32.totalorder %s21, 3
      %s282 = scalar_select %p281, %s21, 3
      %p283 = scmp.lt.s32.totalorder %s22, 0
      %s284 = scalar_select %p283, %s22, 0
      %s285 = sadd.s32 %s284, %s282
      %s286 = smul.addr %s280, 4
      %s287 = sadd.s32 %s285, %s286
      %s288 = smul.addr %s287, 4
      %s289 = scalar_lea.vmem %s3, %s288
      %p290 = scmp.lt.s32.totalorder %s20, 1
      %s291 = scalar_select %p290, %s20, 1
      %p292 = scmp.lt.s32.totalorder %s21, 3
      %s293 = scalar_select %p292, %s21, 3
      %p294 = scmp.lt.s32.totalorder %s22, 0
      %s295 = scalar_select %p294, %s22, 0
      %s296 = sadd.s32 %s295, %s293
      %s297 = smul.addr %s291, 4
      %s298 = sadd.s32 %s296, %s297
      %s299 = smul.addr %s298, 4
      %s300 = scalar_lea.vmem %s0, %s299
      %s301 = smul.u32 3, %s23
      %p302 = scmp.lt.s32.totalorder %s20, 1
      %s303 = scalar_select %p302, %s20, 1
      %p304 = scmp.lt.s32.totalorder %s21, 7
      %s305 = scalar_select %p304, %s21, 7
      %p306 = scmp.lt.s32.totalorder %s301, 2
      %s307 = scalar_select %p306, %s301, 2
      %s308 = smul.addr %s305, 3
      %s309 = sadd.s32 %s307, %s308
      %s310 = smul.addr %s303, 24
      %s311 = sadd.s32 %s309, %s310
      %s312 = smul.addr %s311, 4
      %s313 = scalar_lea.vmem %s1, %s312
      %s314 = smul.u32 3, %s23
      %s315 = sadd.s32 %s21, 4
      %s316 = smul.u32 3, %s23
      %p317 = scmp.lt.s32.totalorder %s20, 1
      %s318 = scalar_select %p317, %s20, 1
      %p319 = scmp.lt.s32.totalorder %s315, 7
      %s320 = scalar_select %p319, %s315, 7
      %p321 = scmp.lt.s32.totalorder %s316, 2
      %s322 = scalar_select %p321, %s316, 2
      %s323 = smul.addr %s320, 3
      %s324 = sadd.s32 %s322, %s323
      %s325 = smul.addr %s318, 24
      %s326 = sadd.s32 %s324, %s325
      %s327 = smul.addr %s326, 4
      %s328 = scalar_lea.vmem %s2, %s327
      %s329 = sadd.s32 %s21, 4
      %s330 = smul.u32 3, %s23
      %p331 = scmp.lt.s32.totalorder %s20, 1
      %s332 = scalar_select %p331, %s20, 1
      %p333 = scmp.lt.s32.totalorder %s21, 3
      %s334 = scalar_select %p333, %s21, 3
      %p335 = scmp.lt.s32.totalorder %s22, 0
      %s336 = scalar_select %p335, %s22, 0
      %s337 = sadd.s32 %s336, %s334
      %s338 = smul.addr %s332, 4
      %s339 = sadd.s32 %s337, %s338
      %s340 = smul.addr %s339, 4
      %s341 = scalar_lea.vmem %s3, %s340
      %p343 = scmp.eq.s32.totalorder %s23, 0
      // Predicated region
      $region33: #{godcaster_layer_forward.7} parent=31 // pred_check
        %p344 = pneg %p343
      $region34: #{godcaster_layer_forward.7} parent=31 // pred_check_branch
        %346 = sbr.rel (%p344) target = $region36
      $region35: #{godcaster_layer_forward.7} parent=31 // pred_region
        %vm347 = vcmask 7168
        %348 = vst.msk [vmem:[#allocation2] sm:$0xff] %vm347, -inf
        %349 = vst.msk [vmem:[#allocation3] sm:$0xff] %vm347, 0.0
        %vm350 = vcmask 64512
        %351 = vst.msk [vmem:[#allocation4] sm:$0xff] %vm350, 0.0
      $region36: #{godcaster_layer_forward.7} parent=31 // pred_fallthru
        _
      %v352 = vld [vmem:[%s300] sm:$0xf]
      %v353 = vld [vmem:[%s313] sm:$0xf]
      %v354 = vld [vmem:[%s313 + $0x4] sm:$0xf]
      %v355 = vld [vmem:[%s313 + $0x8] sm:$0xf]
      %v359 = vunpack.c.l.b16 %v353
      %v360 = vunpack.c.l.b16 %v354
      %v361 = vunpack.c.l.b16 %v355
      %v362 = vpack.c.b16 %v360, %v359
      %v363 = vpack.c.b16 %v361, %v361
      %vm364 = vcmask 64512
      %v366 = vsel %vm364, %v352, 0
      %v369 = vsel %vm364, %v362, 0
      %v372 = vsel %vm364, %v363, 0
      %374 = vmatprep.subr.bf16.mxu0 0
      %375 = vmatpush1.bf16.xpose.msra.mxu0 0
      %376 = vmatprep.subr.bf16.mxu0 0
      %377 = vmatpush1.bf16.xpose.msra.mxu0 0
      %378 = vmatprep.subr.bf16.mxu0 0
      %379 = vmatpush1.bf16.xpose.msra.mxu0 0
      %380 = vmatprep.subr.bf16.mxu0 0
      %381 = vmatpush1.bf16.xpose.msra.mxu0 0
      %382 = vmatprep.subr.bf16.mxu0 0
      %383 = vmatpush1.bf16.xpose.msra.mxu0 0
      %384 = vmatprep.subr.bf16.mxu0 0
      %385 = vmatpush1.bf16.xpose.msra.mxu0 0
      %386 = vmatprep.subr.bf16.mxu0 0
      %387 = vmatpush1.bf16.xpose.msra.mxu0 %v372
      %388 = vmatprep.subr.bf16.mxu0 0
      %389 = vmatpush1.bf16.xpose.msra.mxu0 %v369
      %390 = vmatprep.subr.bf16.mxu0 0
      %391 = vmatpush2.bf16.xpose.msra.mxu0 0
      %392 = vmatprep.subr.bf16.mxu0 0
      %393 = vmatpush2.bf16.xpose.msra.mxu0 0
      %394 = vmatprep.subr.bf16.mxu0 0
      %395 = vmatpush2.bf16.xpose.msra.mxu0 0
      %396 = vmatprep.subr.bf16.mxu0 0
      %397 = vmatpush2.bf16.xpose.msra.mxu0 0
      %398 = vmatprep.subr.bf16.mxu0 0
      %399 = vmatpush2.bf16.xpose.msra.mxu0 0
      %400 = vmatprep.subr.bf16.mxu0 0
      %401 = vmatpush2.bf16.xpose.msra.mxu0 0
      %402 = vmatprep.subr.bf16.mxu0 0
      %403 = vmatpush2.bf16.xpose.msra.mxu0 0
      %404 = vmatprep.subr.bf16.mxu0 0
      %405 = vmatpush2.bf16.xpose.msra.mxu0 0
      %406 = vmatprep.mubr.bf16.mxu0 0
      %407 = vmatmul.mubr.bf16.gmra.mxu0 %v366
      %v408 = vpop.f32.mrf.mxu0
      %v409 = vadd.f32 0.0, %v408
      %v410 = vpop.f32.mrf.mxu0
      %v411 = vpop.f32.mrf.mxu0
      %v412 = vpop.f32.mrf.mxu0
      %413 = vdwg.mxu0
      %v414 = vld [vmem:[#allocation2] sm:$0xff]
      %vm415 = vcmask 195584
      %v416 = vsel %vm415, %v409, -inf
      %417 = vmax.xlane.f32.xlu0 %v416
      %v418 = vpop.xlane.xlu0 %417
      %v419 = vmax.f32 %v414, %v418
      %v420 = vsub.f32 %v414, %v419
      %v421 = vmul.f32 %v420, 1.442695
      %v422 = vpow.pop %v421
      %424 = vset.pattern.permute.xlu0 0
      %425 = vperm.xlu0 %424, %v419
      %v426 = vpop.permute.xlu0 %425
      %v428 = vsub.f32 %v409, %v426
      %v429 = vmul.f32 %v428, 1.442695
      %v430 = vpow.pop %v429
      %v431 = vld [vmem:[#allocation3] sm:$0xff]
      %v432 = vmul.f32 %v422, %v431
      %v433 = vsel %vm415, %v430, 0.0
      %434 = vadd.xlane.f32.xlu0 %v433
      %v435 = vpop.xlane.xlu0 %434
      %v436 = vadd.f32 %v432, %v435
      %vm437 = vcmask 7168
      %438 = vst.msk [vmem:[#allocation3] sm:$0xff] %vm437, %v436
      %v439 = vld [vmem:[#allocation4] sm:$0xff]
      %441 = vset.pattern.permute.xlu0 0
      %442 = vperm.xlu0 %441, %v422
      %v443 = vpop.permute.xlu0 %442
      %v445 = vmul.f32 %v443, %v439
      %v446 = vpack.c.bf16 %v430, %v430
      %v447 = vld [vmem:[%s328] sm:$0xf]
      %v448 = vld [vmem:[%s328 + $0x4] sm:$0xf]
      %v449 = vld [vmem:[%s328 + $0x8] sm:$0xf]
      %v453 = vunpack.c.l.b16 %v447
      %v454 = vunpack.c.l.b16 %v448
      %v455 = vunpack.c.l.b16 %v449
      %v456 = vpack.c.b16 %v454, %v453
      %v457 = vpack.c.b16 %v455, %v455
      %v460 = vsel %vm415, %v446, 0
      %vm462 = vcmask 1043456
      %v464 = vsel %vm462, %v457, 0
      %466 = vmatprep.subr.bf16.mxu0 0
      %467 = vmatpush1.bf16.msra.mxu0 0
      %468 = vmatprep.subr.bf16.mxu0 0
      %469 = vmatpush1.bf16.msra.mxu0 0
      %470 = vmatprep.subr.bf16.mxu0 0
      %471 = vmatpush1.bf16.msra.mxu0 0
      %472 = vmatprep.subr.bf16.mxu0 0
      %473 = vmatpush1.bf16.msra.mxu0 0
      %474 = vmatprep.subr.bf16.mxu0 0
      %475 = vmatpush1.bf16.msra.mxu0 0
      %476 = vmatprep.subr.bf16.mxu0 0
      %477 = vmatpush1.bf16.msra.mxu0 0
      %478 = vmatprep.subr.bf16.mxu0 0
      %479 = vmatpush1.bf16.msra.mxu0 %v464
      %480 = vmatprep.subr.bf16.mxu0 0
      %481 = vmatpush1.bf16.msra.mxu0 %v456
      %482 = vmatprep.subr.bf16.mxu0 0
      %483 = vmatpush2.bf16.msra.mxu0 0
      %484 = vmatprep.subr.bf16.mxu0 0
      %485 = vmatpush2.bf16.msra.mxu0 0
      %486 = vmatprep.subr.bf16.mxu0 0
      %487 = vmatpush2.bf16.msra.mxu0 0
      %488 = vmatprep.subr.bf16.mxu0 0
      %489 = vmatpush2.bf16.msra.mxu0 0
      %490 = vmatprep.subr.bf16.mxu0 0
      %491 = vmatpush2.bf16.msra.mxu0 0
      %492 = vmatprep.subr.bf16.mxu0 0
      %493 = vmatpush2.bf16.msra.mxu0 0
      %494 = vmatprep.subr.bf16.mxu0 0
      %495 = vmatpush2.bf16.msra.mxu0 0
      %496 = vmatprep.subr.bf16.mxu0 0
      %497 = vmatpush2.bf16.msra.mxu0 0
      %498 = vmatprep.mubr.bf16.mxu0 0
      %499 = vmatmul.mubr.bf16.gmra.mxu0 %v460
      %v500 = vpop.f32.mrf.mxu0
      %v501 = vadd.f32 0.0, %v500
      %v502 = vpop.f32.mrf.mxu0
      %v503 = vpop.f32.mrf.mxu0
      %v504 = vpop.f32.mrf.mxu0
      %505 = vdwg.mxu0
      %v506 = vadd.f32 %v445, %v501
      %507 = vst.msk [vmem:[#allocation4] sm:$0xff] %vm364, %v506
      %508 = vst.msk [vmem:[#allocation2] sm:$0xff] %vm437, %v419
      // Predicated region
      $region37: #{godcaster_layer_forward.7} parent=31 // pred_check
        %p509 = pneg %p343
      $region38: #{godcaster_layer_forward.7} parent=31 // pred_check_branch
        %511 = sbr.rel (%p509) target = $region40
      $region39: #{godcaster_layer_forward.7} parent=31 // pred_region
        %v512 = vld [vmem:[#allocation3] sm:$0xff]
        %v513 = vrcp.pop %v512
        %v514 = vld [vmem:[#allocation4] sm:$0xff]
        %516 = vset.pattern.permute.xlu0 0
        %517 = vperm.xlu0 %516, %v513
        %v518 = vpop.permute.xlu0 %517
        %v520 = vmul.f32 %v514, %v518
        %v521 = vpack.c.bf16 %v520, %v520
        %vm522 = vcmask 60416
        %523 = vst.msk [vmem:[%s341] sm:$0xf] %vm522, %v521
      $region40: #{godcaster_layer_forward.7} parent=31 // pred_fallthru
        _
      %p524 = scmp.lt.s32.totalorder %s20, 1
      %s525 = scalar_select %p524, %s20, 1
      %p526 = scmp.lt.s32.totalorder %s21, 3
      %s527 = scalar_select %p526, %s21, 3
      %p528 = scmp.lt.s32.totalorder %s22, 0
      %s529 = scalar_select %p528, %s22, 0
      %s530 = sadd.s32 %s529, %s527
      %s531 = smul.addr %s525, 4
      %s532 = sadd.s32 %s530, %s531
      %s533 = smul.addr %s532, 4
      %s534 = scalar_lea.vmem %s3, %s533
      // Predicated region
      $region41: #{godcaster_layer_forward.7} parent=31 // pred_check
        %p535 = pneg %p154
      $region42: #{godcaster_layer_forward.7} parent=31 // pred_check_branch
        %537 = sbr.rel (%p535) target = $region44
      $region43: #{godcaster_layer_forward.7} parent=31 // pred_region
        _
      $region44: #{godcaster_layer_forward.7} parent=31 // pred_fallthru
        _
    $region32: #{godcaster_layer_forward.7} parent=5 // pred_fallthru
      _
    %p538 = scmp.le.s32.totalorder 2, %s9
    // Predicated region
    $region45: #{godcaster_layer_forward.7} parent=5 // pred_check
      %p539 = pneg %p538
    $region46: #{godcaster_layer_forward.7} parent=5 // pred_check_branch
      %541 = sbr.rel (%p539) target = $region48
    $region47: #{godcaster_layer_forward.7} parent=5 // pred_region
      %s542 = ssub.s32 %s9, 2
      // Predicated region
      $region49: #{godcaster_layer_forward.7} parent=47 // pred_check
        %p543 = pneg %p160
      $region50: #{godcaster_layer_forward.7} parent=47 // pred_check_branch
        %545 = sbr.rel (%p543) target = $region52
      $region51: #{godcaster_layer_forward.7} parent=47 // pred_region
        %p546 = scmp.lt.s32.totalorder %s24, 1
        %s547 = scalar_select %p546, %s24, 1
        %p548 = scmp.lt.s32.totalorder %s25, 3
        %s549 = scalar_select %p548, %s25, 3
        %p550 = scmp.lt.s32.totalorder %s26, 0
        %s551 = scalar_select %p550, %s26, 0
        %s552 = sadd.s32 %s551, %s549
        %s553 = smul.addr %s547, 4
        %s554 = sadd.s32 %s552, %s553
        %s555 = smul.addr %s554, 4
        %s556 = scalar_lea.vmem %s3, %s555
      $region52: #{godcaster_layer_forward.7} parent=47 // pred_fallthru
        _
    $region48: #{godcaster_layer_forward.7} parent=5 // pred_fallthru
      _
  $region6: #{godcaster_layer_forward.7} parent=0 // loop_footer
    %s13 = sadd.s32 1, %s9
  $region7: #{godcaster_layer_forward.7} parent=0 // loop_footer_branch
    %8 = sbr.rel target = $region3
  $region8: #{godcaster_layer_forward.7} parent=0 // loop_exit
    _

// kernel: godcaster_layer_forward.8
$region0: #{godcaster_layer_forward.8}
  #allocation0 [shape = 'u32[]', space=smem, size = 0x4, offset = 0x4, fixed_abs, tag = 'smem constant byte address 0x4 - core index']
  #allocation1 [shape = 'u32[144,128]{1,0:T(1,128)}', space=vmem, size = 0x12000, scoped, tag = 'internal scratch']
  %s0 = inlined_call_operand.vmem [shape: bf16[16,32], index: 0, kind: input, shape index: {}]
  %s1 = inlined_call_operand.vmem [shape: bf16[32,32], index: 1, kind: input, shape index: {}]
  %s2 = inlined_call_operand.vmem [shape: f32[1,32], index: 2, kind: input, shape index: {}]
  %s3 = inlined_call_operand.vmem [shape: bf16[16,32], index: 3, kind: input, shape index: {}]
  %s4 = inlined_call_operand.vmem [shape: f32[1,32], index: 4, kind: input, shape index: {}]
  %s5 = inlined_call_operand.vmem [shape: f32[1,32], index: 5, kind: input, shape index: {}]
  %s6 = inlined_call_operand.vmem [shape: bf16[16,32], index: 6, kind: output, shape index: {}]
  %s7 = sld [smem:[#allocation0]]
  $region34: #{godcaster_layer_forward.8} parent=0
    _
  %s9 = ssub.s32 1, %s7
  %s10 = scalar_select 0, %s9, %s7
  // Predicated region
  $region2: #{godcaster_layer_forward.8} parent=0 // pred_check
    _
  $region3: #{godcaster_layer_forward.8} parent=0 // pred_check_branch
    %12 = sbr.rel (0) target = $region5
  $region4: #{godcaster_layer_forward.8} parent=0 // pred_region
    _
  $region5: #{godcaster_layer_forward.8} parent=0 // pred_fallthru
    _
  // Predicated region
  $region6: #{godcaster_layer_forward.8} parent=0 // pred_check
    _
  $region7: #{godcaster_layer_forward.8} parent=0 // pred_check_branch
    %14 = sbr.rel (0) target = $region9
  $region8: #{godcaster_layer_forward.8} parent=0 // pred_region
    _
  $region9: #{godcaster_layer_forward.8} parent=0 // pred_fallthru
    _
  // Predicated region
  $region10: #{godcaster_layer_forward.8} parent=0 // pred_check
    _
  $region11: #{godcaster_layer_forward.8} parent=0 // pred_check_branch
    %16 = sbr.rel (0) target = $region13
  $region12: #{godcaster_layer_forward.8} parent=0 // pred_region
    _
  $region13: #{godcaster_layer_forward.8} parent=0 // pred_fallthru
    _
  // Predicated region
  $region14: #{godcaster_layer_forward.8} parent=0 // pred_check
    _
  $region15: #{godcaster_layer_forward.8} parent=0 // pred_check_branch
    %18 = sbr.rel (0) target = $region17
  $region16: #{godcaster_layer_forward.8} parent=0 // pred_region
    _
  $region17: #{godcaster_layer_forward.8} parent=0 // pred_fallthru
    _
  // Predicated region
  $region18: #{godcaster_layer_forward.8} parent=0 // pred_check
    _
  $region19: #{godcaster_layer_forward.8} parent=0 // pred_check_branch
    %20 = sbr.rel (0) target = $region21
  $region20: #{godcaster_layer_forward.8} parent=0 // pred_region
    _
  $region21: #{godcaster_layer_forward.8} parent=0 // pred_fallthru
    _
  // Predicated region
  $region22: #{godcaster_layer_forward.8} parent=0 // pred_check
    _
  $region23: #{godcaster_layer_forward.8} parent=0 // pred_check_branch
    %22 = sbr.rel (0) target = $region25
  $region24: #{godcaster_layer_forward.8} parent=0 // pred_region
    _
  $region25: #{godcaster_layer_forward.8} parent=0 // pred_fallthru
    _
  %v24 = vld [vmem:[%s0] sm:$0xf]
  %v25 = vld [vmem:[%s0 + $0x4] sm:$0xf]
  %v26 = vld [vmem:[%s1] sm:$0xf]
  %v27 = vld [vmem:[%s1 + $0x4] sm:$0xf]
  %v28 = vld [vmem:[%s1 + $0x8] sm:$0xf]
  %v29 = vld [vmem:[%s1 + $0xc] sm:$0xf]
  %v30 = vld [vmem:[%s2] sm:$0x1]
  %v32 = vlaneseq
  %v33 = vshrl.u32 %v32, 7
  %v34 = vsub.s32 0, %v33
  %v35 = vrot.slane %v30, %v34
  %v39 = vunpack.c.l.b16 %v24
  %v40 = vunpack.c.l.b16 %v25
  %v41 = vpack.c.b16 %v40, %v39
  %v46 = vunpack.c.l.b16 %v26
  %v47 = vunpack.c.l.b16 %v27
  %v48 = vunpack.c.l.b16 %v28
  %v49 = vunpack.c.l.b16 %v29
  %v50 = vpack.c.b16 %v47, %v46
  %v51 = vpack.c.b16 %v49, %v48
  %vm54 = vcmask 261120
  %v56 = vsel %vm54, %v41, 0
  %58 = vmatprep.subr.bf16.mxu0 0
  %59 = vmatpush1.bf16.msra.mxu0 0
  %60 = vmatprep.subr.bf16.mxu0 0
  %61 = vmatpush1.bf16.msra.mxu0 0
  %62 = vmatprep.subr.bf16.mxu0 0
  %63 = vmatpush1.bf16.msra.mxu0 0
  %64 = vmatprep.subr.bf16.mxu0 0
  %65 = vmatpush1.bf16.msra.mxu0 0
  %66 = vmatprep.subr.bf16.mxu0 0
  %67 = vmatpush1.bf16.msra.mxu0 0
  %68 = vmatprep.subr.bf16.mxu0 0
  %69 = vmatpush1.bf16.msra.mxu0 0
  %70 = vmatprep.subr.bf16.mxu0 0
  %71 = vmatpush1.bf16.msra.mxu0 %v51
  %72 = vmatprep.subr.bf16.mxu0 0
  %73 = vmatpush1.bf16.msra.mxu0 %v50
  %74 = vmatprep.subr.bf16.mxu0 0
  %75 = vmatpush2.bf16.msra.mxu0 0
  %76 = vmatprep.subr.bf16.mxu0 0
  %77 = vmatpush2.bf16.msra.mxu0 0
  %78 = vmatprep.subr.bf16.mxu0 0
  %79 = vmatpush2.bf16.msra.mxu0 0
  %80 = vmatprep.subr.bf16.mxu0 0
  %81 = vmatpush2.bf16.msra.mxu0 0
  %82 = vmatprep.subr.bf16.mxu0 0
  %83 = vmatpush2.bf16.msra.mxu0 0
  %84 = vmatprep.subr.bf16.mxu0 0
  %85 = vmatpush2.bf16.msra.mxu0 0
  %86 = vmatprep.subr.bf16.mxu0 0
  %87 = vmatpush2.bf16.msra.mxu0 0
  %88 = vmatprep.subr.bf16.mxu0 0
  %89 = vmatpush2.bf16.msra.mxu0 0
  %90 = vmatprep.mubr.bf16.mxu0 0
  %91 = vmatmul.mubr.bf16.gmra.mxu0 %v56
  %v92 = vpop.f32.mrf.mxu0
  %v93 = vadd.f32 %v35, %v92
  %v94 = vpop.f32.mrf.mxu0
  %v95 = vpop.f32.mrf.mxu0
  %v96 = vadd.f32 %v35, %v95
  %v97 = vpop.f32.mrf.mxu0
  %98 = vdwg.mxu0
  %v99 = vld [vmem:[%s3] sm:$0xf]
  %v100 = vld [vmem:[%s3 + $0x4] sm:$0xf]
  %v101 = vunpack.c.l.bf16 %v99
  %v102 = vunpack.c.l.bf16 %v100
  %v103 = vadd.f32 %v93, %v101
  %v104 = vadd.f32 %v96, %v102
  %v105 = vld [vmem:[%s4] sm:$0x1]
  %v106 = vld [vmem:[%s5] sm:$0x1]
  %v107 = vsel %vm54, %v103, 0.0
  %108 = vadd.xlane.f32.xlu0 %v107
  %v109 = vpop.xlane.xlu0 %108
  %v110 = vsel %vm54, %v104, 0.0
  %111 = vadd.xlane.f32.xlu0 %v110
  %v112 = vpop.xlane.xlu0 %111
  %v113 = vrcp.pop 32.0
  %v114 = vmul.f32 %v109, %v113
  %v115 = vmul.f32 %v112, %v113
  %v116 = vsub.f32 %v103, %v114
  %v117 = vsub.f32 %v104, %v115
  %v118 = vmul.f32 %v116, %v116
  %v119 = vmul.f32 %v117, %v117
  %v120 = vsel %vm54, %v118, 0.0
  %121 = vadd.xlane.f32.xlu0 %v120
  %v122 = vpop.xlane.xlu0 %121
  %v123 = vsel %vm54, %v119, 0.0
  %124 = vadd.xlane.f32.xlu0 %v123
  %v125 = vpop.xlane.xlu0 %124
  %v126 = vmul.f32 %v122, %v113
  %v127 = vmul.f32 %v125, %v113
  %v128 = vadd.f32 %v126, 1e-12
  %v129 = vadd.f32 %v127, 1e-12
  %v130 = vrsqrt.pop %v128
  %v131 = vrsqrt.pop %v129
  %v132 = vmul.f32 %v116, %v130
  %v133 = vmul.f32 %v117, %v131
  %v135 = vlaneseq
  %v136 = vshrl.u32 %v135, 7
  %v137 = vsub.s32 0, %v136
  %v138 = vrot.slane %v105, %v137
  %v140 = vmul.f32 %v132, %v138
  %v141 = vmul.f32 %v133, %v138
  %v143 = vlaneseq
  %v144 = vshrl.u32 %v143, 7
  %v145 = vsub.s32 0, %v144
  %v146 = vrot.slane %v106, %v145
  %v148 = vadd.f32 %v140, %v146
  %v149 = vadd.f32 %v141, %v146
  %v150 = vpack.c.bf16 %v149, %v148
  %v152 = vunpack.c.l.b16 %v150
  %v153 = vunpack.c.h.b16 %v150
  %v154 = vpack.c.b16 %v152, %v152
  %v155 = vpack.c.b16 %v153, %v153
  %vm158 = vcmask 257024
  %159 = vst.msk [vmem:[%s6] sm:$0xf] %vm158, %v154
  %160 = vst.msk [vmem:[%s6 + $0x4] sm:$0xf] %vm158, %v155
  // Predicated region
  $region26: #{godcaster_layer_forward.8} parent=0 // pred_check
    _
  $region27: #{godcaster_layer_forward.8} parent=0 // pred_check_branch
    %162 = sbr.rel (0) target = $region29
  $region28: #{godcaster_layer_forward.8} parent=0 // pred_region
    _
  $region29: #{godcaster_layer_forward.8} parent=0 // pred_fallthru
    _
  // Predicated region
  $region30: #{godcaster_layer_forward.8} parent=0 // pred_check
    _
  $region31: #{godcaster_layer_forward.8} parent=0 // pred_check_branch
    %164 = sbr.rel (0) target = $region33
  $region32: #{godcaster_layer_forward.8} parent=0 // pred_region
    _
  $region33: #{godcaster_layer_forward.8} parent=0 // pred_fallthru
    _

// kernel: godcaster_layer_forward.9
$region0: #{godcaster_layer_forward.9}
  #allocation0 [shape = 'u32[]', space=smem, size = 0x4, offset = 0x4, fixed_abs, tag = 'smem constant byte address 0x4 - core index']
  #allocation1 [shape = 'u32[144,128]{1,0:T(1,128)}', space=vmem, size = 0x12000, scoped, tag = 'internal scratch']
  #allocation2 [shape = 'f32[16,32]{1,0:T(8,128)}', space=vmem, size = 0x2000, scoped, tag = 'scratch operand']
  %s0 = inlined_call_operand.vmem [shape: bf16[16,32], index: 0, kind: input, shape index: {}]
  %s1 = inlined_call_operand.vmem [shape: bf16[32,64], index: 1, kind: input, shape index: {}]
  %s2 = inlined_call_operand.vmem [shape: f32[1,64], index: 2, kind: input, shape index: {}]
  %s3 = inlined_call_operand.vmem [shape: bf16[64,32], index: 3, kind: input, shape index: {}]
  %s4 = inlined_call_operand.vmem [shape: f32[1,32], index: 4, kind: input, shape index: {}]
  %s5 = inlined_call_operand.vmem [shape: f32[1,32], index: 5, kind: input, shape index: {}]
  %s6 = inlined_call_operand.vmem [shape: f32[1,32], index: 6, kind: input, shape index: {}]
  %s7 = inlined_call_operand.vmem [shape: bf16[16,32], index: 7, kind: output, shape index: {}]
  %s8 = sld [smem:[#allocation0]]
  $region46: #{godcaster_layer_forward.9} parent=0
    _
  %s10 = ssub.s32 1, %s8
  %s11 = scalar_select 0, %s10, %s8
  // Predicated region
  $region2: #{godcaster_layer_forward.9} parent=0 // pred_check
    _
  $region3: #{godcaster_layer_forward.9} parent=0 // pred_check_branch
    %13 = sbr.rel (0) target = $region5
  $region4: #{godcaster_layer_forward.9} parent=0 // pred_region
    _
  $region5: #{godcaster_layer_forward.9} parent=0 // pred_fallthru
    _
  // Predicated region
  $region6: #{godcaster_layer_forward.9} parent=0 // pred_check
    _
  $region7: #{godcaster_layer_forward.9} parent=0 // pred_check_branch
    %15 = sbr.rel (0) target = $region9
  $region8: #{godcaster_layer_forward.9} parent=0 // pred_region
    _
  $region9: #{godcaster_layer_forward.9} parent=0 // pred_fallthru
    _
  // Predicated region
  $region10: #{godcaster_layer_forward.9} parent=0 // pred_check
    _
  $region11: #{godcaster_layer_forward.9} parent=0 // pred_check_branch
    %17 = sbr.rel (0) target = $region13
  $region12: #{godcaster_layer_forward.9} parent=0 // pred_region
    _
  $region13: #{godcaster_layer_forward.9} parent=0 // pred_fallthru
    _
  // Predicated region
  $region14: #{godcaster_layer_forward.9} parent=0 // pred_check
    _
  $region15: #{godcaster_layer_forward.9} parent=0 // pred_check_branch
    %19 = sbr.rel (0) target = $region17
  $region16: #{godcaster_layer_forward.9} parent=0 // pred_region
    _
  $region17: #{godcaster_layer_forward.9} parent=0 // pred_fallthru
    _
  // Predicated region
  $region18: #{godcaster_layer_forward.9} parent=0 // pred_check
    _
  $region19: #{godcaster_layer_forward.9} parent=0 // pred_check_branch
    %21 = sbr.rel (0) target = $region21
  $region20: #{godcaster_layer_forward.9} parent=0 // pred_region
    _
  $region21: #{godcaster_layer_forward.9} parent=0 // pred_fallthru
    _
  // Predicated region
  $region22: #{godcaster_layer_forward.9} parent=0 // pred_check
    _
  $region23: #{godcaster_layer_forward.9} parent=0 // pred_check_branch
    %23 = sbr.rel (0) target = $region25
  $region24: #{godcaster_layer_forward.9} parent=0 // pred_region
    _
  $region25: #{godcaster_layer_forward.9} parent=0 // pred_fallthru
    _
  // Predicated region
  $region26: #{godcaster_layer_forward.9} parent=0 // pred_check
    _
  $region27: #{godcaster_layer_forward.9} parent=0 // pred_check_branch
    %25 = sbr.rel (0) target = $region29
  $region28: #{godcaster_layer_forward.9} parent=0 // pred_region
    _
  $region29: #{godcaster_layer_forward.9} parent=0 // pred_fallthru
    _
  %p27 = scmp.eq.s32.totalorder 0, 0
  // Predicated region
  $region30: #{godcaster_layer_forward.9} parent=0 // pred_check
    %p28 = pneg %p27
  $region31: #{godcaster_layer_forward.9} parent=0 // pred_check_branch
    %30 = sbr.rel (%p28) target = $region33
  $region32: #{godcaster_layer_forward.9} parent=0 // pred_region
    %vm31 = vcmask 261120
    %32 = vst.msk [vmem:[#allocation2] sm:$0xff] %vm31, 0.0
    %33 = vst.msk [vmem:[#allocation2 + $0x8] sm:$0xff] %vm31, 0.0
  $region33: #{godcaster_layer_forward.9} parent=0 // pred_fallthru
    _
  %v34 = vld [vmem:[%s0] sm:$0xf]
  %v35 = vld [vmem:[%s0 + $0x4] sm:$0xf]
  %v36 = vld [vmem:[%s1] sm:$0xf]
  %v37 = vld [vmem:[%s1 + $0x4] sm:$0xf]
  %v38 = vld [vmem:[%s1 + $0x8] sm:$0xf]
  %v39 = vld [vmem:[%s1 + $0xc] sm:$0xf]
  %v40 = vld [vmem:[%s2] sm:$0x1]
  %v42 = vlaneseq
  %v43 = vshrl.u32 %v42, 7
  %v44 = vsub.s32 0, %v43
  %v45 = vrot.slane %v40, %v44
  %v49 = vunpack.c.l.b16 %v34
  %v50 = vunpack.c.l.b16 %v35
  %v51 = vpack.c.b16 %v50, %v49
  %v56 = vunpack.c.l.b16 %v36
  %v57 = vunpack.c.l.b16 %v37
  %v58 = vunpack.c.l.b16 %v38
  %v59 = vunpack.c.l.b16 %v39
  %v60 = vpack.c.b16 %v57, %v56
  %v61 = vpack.c.b16 %v59, %v58
  %vm64 = vcmask 261120
  %v66 = vsel %vm64, %v51, 0
  %68 = vmatprep.subr.bf16.mxu0 0
  %69 = vmatpush1.bf16.msra.mxu0 0
  %70 = vmatprep.subr.bf16.mxu0 0
  %71 = vmatpush1.bf16.msra.mxu0 0
  %72 = vmatprep.subr.bf16.mxu0 0
  %73 = vmatpush1.bf16.msra.mxu0 0
  %74 = vmatprep.subr.bf16.mxu0 0
  %75 = vmatpush1.bf16.msra.mxu0 0
  %76 = vmatprep.subr.bf16.mxu0 0
  %77 = vmatpush1.bf16.msra.mxu0 0
  %78 = vmatprep.subr.bf16.mxu0 0
  %79 = vmatpush1.bf16.msra.mxu0 0
  %80 = vmatprep.subr.bf16.mxu0 0
  %81 = vmatpush1.bf16.msra.mxu0 %v61
  %82 = vmatprep.subr.bf16.mxu0 0
  %83 = vmatpush1.bf16.msra.mxu0 %v60
  %84 = vmatprep.subr.bf16.mxu0 0
  %85 = vmatpush2.bf16.msra.mxu0 0
  %86 = vmatprep.subr.bf16.mxu0 0
  %87 = vmatpush2.bf16.msra.mxu0 0
  %88 = vmatprep.subr.bf16.mxu0 0
  %89 = vmatpush2.bf16.msra.mxu0 0
  %90 = vmatprep.subr.bf16.mxu0 0
  %91 = vmatpush2.bf16.msra.mxu0 0
  %92 = vmatprep.subr.bf16.mxu0 0
  %93 = vmatpush2.bf16.msra.mxu0 0
  %94 = vmatprep.subr.bf16.mxu0 0
  %95 = vmatpush2.bf16.msra.mxu0 0
  %96 = vmatprep.subr.bf16.mxu0 0
  %97 = vmatpush2.bf16.msra.mxu0 0
  %98 = vmatprep.subr.bf16.mxu0 0
  %99 = vmatpush2.bf16.msra.mxu0 0
  %100 = vmatprep.mubr.bf16.mxu0 0
  %101 = vmatmul.mubr.bf16.gmra.mxu0 %v66
  %v102 = vpop.f32.mrf.mxu0
  %v103 = vadd.f32 %v45, %v102
  %v104 = vpop.f32.mrf.mxu0
  %v105 = vpop.f32.mrf.mxu0
  %v106 = vadd.f32 %v45, %v105
  %v107 = vpop.f32.mrf.mxu0
  %108 = vdwg.mxu0
  %v109 = vmul.f32 %v103, %v103
  %v110 = vmul.f32 %v106, %v106
  %v111 = vmul.f32 %v103, %v109
  %v112 = vmul.f32 %v106, %v110
  %v113 = vmul.f32 %v111, 0.044715
  %v114 = vmul.f32 %v112, 0.044715
  %v115 = vadd.f32 %v103, %v113
  %v116 = vadd.f32 %v106, %v114
  %v117 = vmul.f32 %v115, 0.7978846
  %v118 = vmul.f32 %v116, 0.7978846
  %v119 = vtanh.pop %v117
  %v120 = vtanh.pop %v118
  %v121 = vadd.f32 %v119, 1.0
  %v122 = vadd.f32 %v120, 1.0
  %v123 = vmul.f32 %v121, 0.5
  %v124 = vmul.f32 %v122, 0.5
  %v125 = vmul.f32 %v103, %v123
  %v126 = vmul.f32 %v106, %v124
  %v127 = vld [vmem:[#allocation2] sm:$0xff]
  %v128 = vld [vmem:[#allocation2 + $0x8] sm:$0xff]
  %v129 = vpack.c.bf16 %v126, %v125
  %v130 = vld [vmem:[%s3] sm:$0xf]
  %v131 = vld [vmem:[%s3 + $0x4] sm:$0xf]
  %v132 = vld [vmem:[%s3 + $0x8] sm:$0xf]
  %v133 = vld [vmem:[%s3 + $0xc] sm:$0xf]
  %v134 = vld [vmem:[%s3 + $0x10] sm:$0xf]
  %v135 = vld [vmem:[%s3 + $0x14] sm:$0xf]
  %v136 = vld [vmem:[%s3 + $0x18] sm:$0xf]
  %v137 = vld [vmem:[%s3 + $0x1c] sm:$0xf]
  %v146 = vunpack.c.l.b16 %v130
  %v147 = vunpack.c.l.b16 %v131
  %v148 = vunpack.c.l.b16 %v132
  %v149 = vunpack.c.l.b16 %v133
  %v150 = vunpack.c.l.b16 %v134
  %v151 = vunpack.c.l.b16 %v135
  %v152 = vunpack.c.l.b16 %v136
  %v153 = vunpack.c.l.b16 %v137
  %v154 = vpack.c.b16 %v147, %v146
  %v155 = vpack.c.b16 %v149, %v148
  %v156 = vpack.c.b16 %v151, %v150
  %v157 = vpack.c.b16 %v153, %v152
  %vm162 = vcmask 523264
  %v164 = vsel %vm162, %v129, 0
  %166 = vmatprep.subr.bf16.mxu0 0
  %167 = vmatpush1.bf16.msra.mxu0 0
  %168 = vmatprep.subr.bf16.mxu0 0
  %169 = vmatpush1.bf16.msra.mxu0 0
  %170 = vmatprep.subr.bf16.mxu0 0
  %171 = vmatpush1.bf16.msra.mxu0 0
  %172 = vmatprep.subr.bf16.mxu0 0
  %173 = vmatpush1.bf16.msra.mxu0 0
  %174 = vmatprep.subr.bf16.mxu0 0
  %175 = vmatpush1.bf16.msra.mxu0 %v157
  %176 = vmatprep.subr.bf16.mxu0 0
  %177 = vmatpush1.bf16.msra.mxu0 %v156
  %178 = vmatprep.subr.bf16.mxu0 0
  %179 = vmatpush1.bf16.msra.mxu0 %v155
  %180 = vmatprep.subr.bf16.mxu0 0
  %181 = vmatpush1.bf16.msra.mxu0 %v154
  %182 = vmatprep.subr.bf16.mxu0 0
  %183 = vmatpush2.bf16.msra.mxu0 0
  %184 = vmatprep.subr.bf16.mxu0 0
  %185 = vmatpush2.bf16.msra.mxu0 0
  %186 = vmatprep.subr.bf16.mxu0 0
  %187 = vmatpush2.bf16.msra.mxu0 0
  %188 = vmatprep.subr.bf16.mxu0 0
  %189 = vmatpush2.bf16.msra.mxu0 0
  %190 = vmatprep.subr.bf16.mxu0 0
  %191 = vmatpush2.bf16.msra.mxu0 0
  %192 = vmatprep.subr.bf16.mxu0 0
  %193 = vmatpush2.bf16.msra.mxu0 0
  %194 = vmatprep.subr.bf16.mxu0 0
  %195 = vmatpush2.bf16.msra.mxu0 0
  %196 = vmatprep.subr.bf16.mxu0 0
  %197 = vmatpush2.bf16.msra.mxu0 0
  %198 = vmatprep.mubr.bf16.mxu0 0
  %199 = vmatmul.mubr.bf16.gmra.mxu0 %v164
  %v200 = vpop.f32.mrf.mxu0
  %v201 = vadd.f32 0.0, %v200
  %v202 = vpop.f32.mrf.mxu0
  %v203 = vpop.f32.mrf.mxu0
  %v204 = vadd.f32 0.0, %v203
  %v205 = vpop.f32.mrf.mxu0
  %206 = vdwg.mxu0
  %v207 = vadd.f32 %v127, %v201
  %v208 = vadd.f32 %v128, %v204
  %209 = vst.msk [vmem:[#allocation2] sm:$0xff] %vm64, %v207
  %210 = vst.msk [vmem:[#allocation2 + $0x8] sm:$0xff] %vm64, %v208
  // Predicated region
  $region34: #{godcaster_layer_forward.9} parent=0 // pred_check
    %p211 = pneg %p27
  $region35: #{godcaster_layer_forward.9} parent=0 // pred_check_branch
    %213 = sbr.rel (%p211) target = $region37
  $region36: #{godcaster_layer_forward.9} parent=0 // pred_region
    %v214 = vld [vmem:[#allocation2] sm:$0xff]
    %v215 = vld [vmem:[#allocation2 + $0x8] sm:$0xff]
    %v216 = vld [vmem:[%s4] sm:$0x1]
    %v218 = vlaneseq
    %v219 = vshrl.u32 %v218, 7
    %v220 = vsub.s32 0, %v219
    %v221 = vrot.slane %v216, %v220
    %v223 = vadd.f32 %v214, %v221
    %v224 = vadd.f32 %v215, %v221
    %v225 = vld [vmem:[%s0] sm:$0xf]
    %v226 = vld [vmem:[%s0 + $0x4] sm:$0xf]
    %v227 = vunpack.c.l.bf16 %v225
    %v228 = vunpack.c.l.bf16 %v226
    %v229 = vadd.f32 %v223, %v227
    %v230 = vadd.f32 %v224, %v228
    %v231 = vld [vmem:[%s5] sm:$0x1]
    %v232 = vld [vmem:[%s6] sm:$0x1]
    %v233 = vsel %vm64, %v229, 0.0
    %234 = vadd.xlane.f32.xlu0 %v233
    %v235 = vpop.xlane.xlu0 %234
    %v236 = vsel %vm64, %v230, 0.0
    %237 = vadd.xlane.f32.xlu0 %v236
    %v238 = vpop.xlane.xlu0 %237
    %v239 = vrcp.pop 32.0
    %v240 = vmul.f32 %v235, %v239
    %v241 = vmul.f32 %v238, %v239
    %v242 = vsub.f32 %v229, %v240
    %v243 = vsub.f32 %v230, %v241
    %v244 = vmul.f32 %v242, %v242
    %v245 = vmul.f32 %v243, %v243
    %v246 = vsel %vm64, %v244, 0.0
    %247 = vadd.xlane.f32.xlu0 %v246
    %v248 = vpop.xlane.xlu0 %247
    %v249 = vsel %vm64, %v245, 0.0
    %250 = vadd.xlane.f32.xlu0 %v249
    %v251 = vpop.xlane.xlu0 %250
    %v252 = vmul.f32 %v248, %v239
    %v253 = vmul.f32 %v251, %v239
    %v254 = vadd.f32 %v252, 1e-12
    %v255 = vadd.f32 %v253, 1e-12
    %v256 = vrsqrt.pop %v254
    %v257 = vrsqrt.pop %v255
    %v258 = vmul.f32 %v242, %v256
    %v259 = vmul.f32 %v243, %v257
    %v261 = vlaneseq
    %v262 = vshrl.u32 %v261, 7
    %v263 = vsub.s32 0, %v262
    %v264 = vrot.slane %v231, %v263
    %v266 = vmul.f32 %v258, %v264
    %v267 = vmul.f32 %v259, %v264
    %v269 = vlaneseq
    %v270 = vshrl.u32 %v269, 7
    %v271 = vsub.s32 0, %v270
    %v272 = vrot.slane %v232, %v271
    %v274 = vadd.f32 %v266, %v272
    %v275 = vadd.f32 %v267, %v272
    %v276 = vpack.c.bf16 %v275, %v274
    %v278 = vunpack.c.l.b16 %v276
    %v279 = vunpack.c.h.b16 %v276
    %v280 = vpack.c.b16 %v278, %v278
    %v281 = vpack.c.b16 %v279, %v279
    %vm284 = vcmask 257024
    %285 = vst.msk [vmem:[%s7] sm:$0xf] %vm284, %v280
    %286 = vst.msk [vmem:[%s7 + $0x4] sm:$0xf] %vm284, %v281
  $region37: #{godcaster_layer_forward.9} parent=0 // pred_fallthru
    _
  // Predicated region
  $region38: #{godcaster_layer_forward.9} parent=0 // pred_check
    _
  $region39: #{godcaster_layer_forward.9} parent=0 // pred_check_branch
    %288 = sbr.rel (0) target = $region41
  $region40: #{godcaster_layer_forward.9} parent=0 // pred_region
    _
  $region41: #{godcaster_layer_forward.9} parent=0 // pred_fallthru
    _
  // Predicated region
  $region42: #{godcaster_layer_forward.9} parent=0 // pred_check
    _
  $region43: #{godcaster_layer_forward.9} parent=0 // pred_check_branch
    %290 = sbr.rel (0) target = $region45
  $region44: #{godcaster_layer_forward.9} parent=0 // pred_region
    _
  $region45: #{godcaster_layer_forward.9} parent=0 // pred_fallthru
    _

</llo_original>
